<compile_context>
chip_gen: v7x
topology: tpu7x:2x2x1
jax: 0.10.0
libtpu: 0.0.40
codegen_flags: <defaults>
</compile_context>

<pallas_src>
import numpy as np
import jax
import jax.numpy as jnp
from jax import lax
from jax.experimental import pallas as pl
from jax.experimental.pallas import tpu as pltpu


KSIZE = 3
CIN = 2                         # module input channels
CIN_PAD = 8                     # pad input channels so concat pieces are sublane aligned
CHANNELS = (CIN, 8, 16, 16)     # input channels + the three conv output channel counts
MAX_TB = 8                      # max images packed per grid step (lane axis)


def _choose_tb(batch, max_tb=MAX_TB):
    """Largest divisor of `batch` <= max_tb that still leaves >= 2 grid steps
    (keeps both v7x TensorCores busy); fall back to the largest divisor otherwise."""
    divs = [d for d in range(1, min(batch, max_tb) + 1) if batch % d == 0]
    two_step = [d for d in divs if batch // d >= 2]
    return max(two_step) if two_step else max(divs)


# --------------------------------- kernel ------------------------------------ #

def make_fused_kernel(h, w, tb):
    hw = h * w
    L = tb * hw
    # tap (kh, kw) reads input at flat position p + kh*w + kw on the ORIGINAL h x w grid
    offs = tuple(kh * w + kw for kh in range(KSIZE) for kw in range(KSIZE))

    def conv_bn_relu(act, w_ref, s_ref, t_ref):
        # act: (Cin, L) f32.  Input-side im2col: 9 lane-rolled copies stacked on the
        # sublane axis, then ONE MXU matmul with K = 9*Cin.  Rolls keep the full
        # (multiple-of-128) lane width; valid positions never read across an image
        # boundary (max offset 2w+2 < H*W), so images packed on lanes don't mix.
        taps = [act if off == 0 else pltpu.roll(act, shift=(L - off) % L, axis=1)
                for off in offs]
        stacked = jnp.concatenate(taps, axis=0).astype(jnp.bfloat16)    # (9*Cin, L)
        y = jnp.dot(w_ref[...], stacked, preferred_element_type=jnp.float32)
        # folded eval-mode BatchNorm affine + ReLU (f32)
        return jnp.maximum(y * s_ref[...] + t_ref[...], 0.0)           # (Cout, L)

    def kernel(x_ref,
               w1_ref, s1_ref, t1_ref,
               w2_ref, s2_ref, t2_ref,
               w3_ref, s3_ref, t3_ref,
               wh_ref, sel_ref, bh_ref, o_ref):
        act = x_ref[0]                                                  # (CIN_PAD, L)
        act = conv_bn_relu(act, w1_ref, s1_ref, t1_ref)                 # (8,  L)
        act = conv_bn_relu(act, w2_ref, s2_ref, t2_ref)                 # (16, L)
        act = conv_bn_relu(act, w3_ref, s3_ref, t3_ref)                 # (16, L)

        # Linear head: out[o, b] = sum_{c,p} wh[o, c, b*hw+p] * act[c, b*hw+p] + bias.
        # wh is zero at garbage spatial positions (and replicated per packed image).
        t = jnp.sum(wh_ref[...] * act[None, :, :], axis=1)              # (O, L)  f32
        # per-image spatial reduction as ONE matmul against a block-selector (L, TB)
        res = jnp.dot(t, sel_ref[...],
                      preferred_element_type=jnp.float32) + bh_ref[...]  # (O, TB)
        o_ref[0] = res.astype(o_ref.dtype)

    return kernel


# --------------------------- host-side weight packing ------------------------ #

def _pack_conv(wt, cin_pad):
    # (Cout, Cin, 3, 3) -> bf16 (Cout, 9*cin_pad); column index = (kh*3 + kw)*cin_pad + ci
    cout, cin, kh, kw = wt.shape
    wt = jnp.pad(wt, ((0, 0), (0, cin_pad - cin), (0, 0), (0, 0)))
    wt = jnp.transpose(wt, (0, 2, 3, 1)).reshape(cout, kh * kw * cin_pad)
    return wt.astype(jnp.bfloat16)


def _pack_head(head_w, c3, h3, w3, h, w):
    # torch head weight (O, C3*H3*W3), flatten order (c, h, w) -> f32 (O, C3, H*W),
    # indexed by the in-kernel flat position p = r*w + col; garbage positions get 0.
    o = head_w.shape[0]
    t = head_w.reshape(o, c3, h3, w3)
    t = jnp.pad(t, ((0, 0), (0, 0), (0, h - h3), (0, w - w3)))
    return t.reshape(o, c3, h * w).astype(jnp.float32)


def _resident_spec(arr):
    nd = arr.ndim
    return pl.BlockSpec(arr.shape, lambda g, _nd=nd: (0,) * _nd)


# --------------------------------- forward ----------------------------------- #

def forward(x_nchw, params):
    B, cin, H, W = x_nchw.shape
    assert cin == CIN
    assert H >= 7 and W >= 7, "three VALID 3x3 convs need H, W >= 7"
    out_size = params["head_b"].shape[0]
    TB = _choose_tb(B)
    G = B // TB
    HW = H * W
    L = TB * HW

    kernel = make_fused_kernel(H, W, TB)

    # NCHW -> channel-major with TB images packed on the lane axis; channels padded
    # to CIN_PAD so the in-kernel sublane concat stays tile aligned.
    x_packed = (x_nchw.reshape(G, TB, cin, HW)
                .transpose(0, 2, 1, 3)
                .reshape(G, cin, L))
    x_packed = jnp.pad(x_packed, ((0, 0), (0, CIN_PAD - cin), (0, 0)))

    wh_tiled = jnp.tile(params["head_w"], (1, 1, TB))                   # (O, C3, L)
    sel = jnp.repeat(jnp.eye(TB, dtype=jnp.float32), HW, axis=0)        # (L, TB)

    operands = [x_packed]
    in_specs = [pl.BlockSpec((1, CIN_PAD, L), lambda g: (g, 0, 0))]
    for (w_pk, s, t) in params["convs"]:
        operands += [w_pk, s, t]
        in_specs += [_resident_spec(w_pk), _resident_spec(s), _resident_spec(t)]
    operands += [wh_tiled, sel, params["head_b"]]
    in_specs += [_resident_spec(wh_tiled), _resident_spec(sel),
                 _resident_spec(params["head_b"])]

    out = pl.pallas_call(
        kernel,
        out_shape=jax.ShapeDtypeStruct((G, out_size, TB), jnp.float32),
        grid=(G,),
        in_specs=in_specs,
        out_specs=pl.BlockSpec((1, out_size, TB), lambda g: (g, 0, 0)),
        compiler_params=pltpu.CompilerParams(
            dimension_semantics=("parallel",),
            vmem_limit_bytes=32 * 1024 * 1024),
    )(*operands)

    # (G, O, TB) -> (B, O)
    return out.transpose(0, 2, 1).reshape(B, out_size)


# ------------------------- deterministic parameters -------------------------- #

def _conv_init(key, cin, cout, k=3):
    kw_, kb = jax.random.split(key)
    bound = 1.0 / np.sqrt(cin * k * k)
    wt = jax.random.uniform(kw_, (cout, cin, k, k), jnp.float32, -bound, bound)
    b = jax.random.uniform(kb, (cout,), jnp.float32, -bound, bound)
    return wt, b


def _bn_init(key, c):
    kg, kb, km, kv = jax.random.split(key, 4)
    gamma = jax.random.uniform(kg, (c,), jnp.float32, 0.5, 1.5)
    beta = jax.random.uniform(kb, (c,), jnp.float32, -0.5, 0.5)
    mean = jax.random.uniform(km, (c,), jnp.float32, -0.5, 0.5)
    var = jax.random.uniform(kv, (c,), jnp.float32, 0.5, 1.5)
    return gamma, beta, mean, var


def _fold_bn(conv_b, gamma, beta, mean, var, eps=1e-5):
    s = gamma / jnp.sqrt(var + eps)
    return s, beta + (conv_b - mean) * s


def init_params(key, h, w, out_size):
    assert h >= 7 and w >= 7
    keys = jax.random.split(key, 8)
    w1, b1 = _conv_init(keys[0], CHANNELS[0], CHANNELS[1])
    g1, be1, m1, v1 = _bn_init(keys[1], CHANNELS[1])
    w2, b2 = _conv_init(keys[2], CHANNELS[1], CHANNELS[2])
    g2, be2, m2, v2 = _bn_init(keys[3], CHANNELS[2])
    w3, b3 = _conv_init(keys[4], CHANNELS[2], CHANNELS[3])
    g3, be3, m3, v3 = _bn_init(keys[5], CHANNELS[3])

    conv_h, conv_w = h - 6, w - 6                    # three 3x3 VALID convs
    lin_in = conv_h * conv_w * CHANNELS[3]
    bound = 1.0 / np.sqrt(lin_in)
    hw_ = jax.random.uniform(keys[6], (out_size, lin_in), jnp.float32, -bound, bound)
    hb = jax.random.uniform(keys[7], (out_size,), jnp.float32, -bound, bound)

    convs = []
    cin_pads = (CIN_PAD, CHANNELS[1], CHANNELS[2])
    raw_layers = [(w1, b1, g1, be1, m1, v1),
                  (w2, b2, g2, be2, m2, v2),
                  (w3, b3, g3, be3, m3, v3)]
    for (wc, bc, g, bt, m, v), cin_pad in zip(raw_layers, cin_pads):
        s, sh = _fold_bn(bc, g, bt, m, v)
        convs.append((_pack_conv(wc, cin_pad),
                      s.reshape(-1, 1).astype(jnp.float32),
                      sh.reshape(-1, 1).astype(jnp.float32)))

    params = {"convs": convs,
              "head_w": _pack_head(hw_, CHANNELS[3], conv_h, conv_w, h, w),
              "head_b": hb.reshape(-1, 1).astype(jnp.float32)}
    raw = {"convs": raw_layers, "head_w": hw_, "head_b": hb}
    return params, raw


# -------------------------------- plain-JAX ref ------------------------------ #

def ref_forward(x, raw, eps=1e-5):
    for (wt, b, g, bt, m, v) in raw["convs"]:
        x = lax.conv_general_dilated(x, wt, (1, 1), "VALID",
                                     dimension_numbers=("NCHW", "OIHW", "NCHW"))
        x = x + b[None, :, None, None]
        x = (g[None, :, None, None] * (x - m[None, :, None, None])
             / jnp.sqrt(v[None, :, None, None] + eps)) + bt[None, :, None, None]
        x = jnp.maximum(x, 0.0)
    x = x.reshape(x.shape[0], -1)
    return jnp.dot(x, raw["head_w"].T) + raw["head_b"]


# ------------------------------------ main ------------------------------------ #

if __name__ == "__main__":
    H = W = 16
    OUT_SIZE = 8

    key = jax.random.PRNGKey(0)
    kp, kx1, kx2 = jax.random.split(key, 3)
    params, raw = init_params(kp, H, W, OUT_SIZE)

    fwd = jax.jit(forward)

    # B=2 -> TB=1, grid=(2,);  B=8 -> TB=4, grid=(2,) exercises batch-on-lanes packing.
    for B, kx in ((2, kx1), (8, kx2)):
        x = jax.random.normal(kx, (B, CIN, H, W), jnp.float32)   # NCHW, like PyTorch
        out = jax.block_until_ready(fwd(x, params))
        ref = ref_forward(x, raw)
        # Explicit bf16 MXU operands with f32 accumulation -> relaxed tolerance.
        np.testing.assert_allclose(np.asarray(out), np.asarray(ref),
                                   rtol=3e-2, atol=3e-2)
        assert out.shape == (B, OUT_SIZE)

    print("KERNEL_OK")
</pallas_src>

<mosaic_0001>
module attributes {stable_mosaic.version = 11 : i64} {
  func.func @kernel(%arg0: i32, %arg1: memref<1x8x256xf32, #tpu.memory_space<vmem>>, %arg2: memref<8x72xbf16, #tpu.memory_space<vmem>>, %arg3: memref<8x1xf32, #tpu.memory_space<vmem>>, %arg4: memref<8x1xf32, #tpu.memory_space<vmem>>, %arg5: memref<16x72xbf16, #tpu.memory_space<vmem>>, %arg6: memref<16x1xf32, #tpu.memory_space<vmem>>, %arg7: memref<16x1xf32, #tpu.memory_space<vmem>>, %arg8: memref<16x144xbf16, #tpu.memory_space<vmem>>, %arg9: memref<16x1xf32, #tpu.memory_space<vmem>>, %arg10: memref<16x1xf32, #tpu.memory_space<vmem>>, %arg11: memref<8x16x256xf32, #tpu.memory_space<vmem>>, %arg12: memref<256x1xf32, #tpu.memory_space<vmem>>, %arg13: memref<8x1xf32, #tpu.memory_space<vmem>>, %arg14: memref<1x8x1xf32, #tpu.memory_space<vmem>>) attributes {dimension_semantics = [#tpu.dimension_semantics<parallel>], iteration_bounds = array<i64: 2>, scalar_prefetch = 0 : i64, scratch_operands = 0 : i64, tpu.core_type = #tpu.core_type<tc>, window_params = [{transform_indices = @transform_0, window_bounds = array<i64: 1, 8, 256>}, {pipeline_mode = #tpu.pipeline_mode<synchronous>, transform_indices = @transform_1, window_bounds = array<i64: 8, 72>}, {pipeline_mode = #tpu.pipeline_mode<synchronous>, transform_indices = @transform_2, window_bounds = array<i64: 8, 1>}, {pipeline_mode = #tpu.pipeline_mode<synchronous>, transform_indices = @transform_3, window_bounds = array<i64: 8, 1>}, {pipeline_mode = #tpu.pipeline_mode<synchronous>, transform_indices = @transform_4, window_bounds = array<i64: 16, 72>}, {pipeline_mode = #tpu.pipeline_mode<synchronous>, transform_indices = @transform_5, window_bounds = array<i64: 16, 1>}, {pipeline_mode = #tpu.pipeline_mode<synchronous>, transform_indices = @transform_6, window_bounds = array<i64: 16, 1>}, {pipeline_mode = #tpu.pipeline_mode<synchronous>, transform_indices = @transform_7, window_bounds = array<i64: 16, 144>}, {pipeline_mode = #tpu.pipeline_mode<synchronous>, transform_indices = @transform_8, window_bounds = array<i64: 16, 1>}, {pipeline_mode = #tpu.pipeline_mode<synchronous>, transform_indices = @transform_9, window_bounds = array<i64: 16, 1>}, {pipeline_mode = #tpu.pipeline_mode<synchronous>, transform_indices = @transform_10, window_bounds = array<i64: 8, 16, 256>}, {pipeline_mode = #tpu.pipeline_mode<synchronous>, transform_indices = @transform_11, window_bounds = array<i64: 256, 1>}, {pipeline_mode = #tpu.pipeline_mode<synchronous>, transform_indices = @transform_12, window_bounds = array<i64: 8, 1>}, {transform_indices = @transform_13, window_bounds = array<i64: 1, 8, 1>}]} {
    %c0 = arith.constant 0 : index
    %c0_0 = arith.constant 0 : index
    %c0_1 = arith.constant 0 : index
    %0 = vector.load %arg1[%c0, %c0_0, %c0_1] : memref<1x8x256xf32, #tpu.memory_space<vmem>>, vector<1x8x256xf32>
    %1 = vector.shape_cast %0 : vector<1x8x256xf32> to vector<8x256xf32>
    %c255_i32 = arith.constant 255 : i32
    %2 = tpu.dynamic_rotate %1 by %c255_i32 dim 1 : vector<8x256xf32>, i32 -> vector<8x256xf32>
    %c254_i32 = arith.constant 254 : i32
    %3 = tpu.dynamic_rotate %1 by %c254_i32 dim 1 : vector<8x256xf32>, i32 -> vector<8x256xf32>
    %c240_i32 = arith.constant 240 : i32
    %4 = tpu.dynamic_rotate %1 by %c240_i32 dim 1 : vector<8x256xf32>, i32 -> vector<8x256xf32>
    %c239_i32 = arith.constant 239 : i32
    %5 = tpu.dynamic_rotate %1 by %c239_i32 dim 1 : vector<8x256xf32>, i32 -> vector<8x256xf32>
    %c238_i32 = arith.constant 238 : i32
    %6 = tpu.dynamic_rotate %1 by %c238_i32 dim 1 : vector<8x256xf32>, i32 -> vector<8x256xf32>
    %c224_i32 = arith.constant 224 : i32
    %7 = tpu.dynamic_rotate %1 by %c224_i32 dim 1 : vector<8x256xf32>, i32 -> vector<8x256xf32>
    %c223_i32 = arith.constant 223 : i32
    %8 = tpu.dynamic_rotate %1 by %c223_i32 dim 1 : vector<8x256xf32>, i32 -> vector<8x256xf32>
    %c222_i32 = arith.constant 222 : i32
    %9 = tpu.dynamic_rotate %1 by %c222_i32 dim 1 : vector<8x256xf32>, i32 -> vector<8x256xf32>
    %10 = tpu.concatenate %1, %2, %3, %4, %5, %6, %7, %8, %9 in 0 : vector<8x256xf32>, vector<8x256xf32>, vector<8x256xf32>, vector<8x256xf32>, vector<8x256xf32>, vector<8x256xf32>, vector<8x256xf32>, vector<8x256xf32>, vector<8x256xf32> -> vector<72x256xf32>
    %11 = arith.truncf %10 : vector<72x256xf32> to vector<72x256xbf16>
    %c0_2 = arith.constant 0 : index
    %c0_3 = arith.constant 0 : index
    %12 = vector.load %arg2[%c0_2, %c0_3] : memref<8x72xbf16, #tpu.memory_space<vmem>>, vector<8x72xbf16>
    %cst = arith.constant dense<0.000000e+00> : vector<8x256xf32>
    %13 = tpu.matmul %12, %11, %cst {dimension_numbers = #tpu.dot_dimension_numbers<[1], [0], [0], [1], [0, 0, 1, 1], [], []>} : vector<8x72xbf16>, vector<72x256xbf16>, vector<8x256xf32> -> vector<8x256xf32>
    %c0_4 = arith.constant 0 : index
    %c0_5 = arith.constant 0 : index
    %14 = vector.load %arg3[%c0_4, %c0_5] : memref<8x1xf32, #tpu.memory_space<vmem>>, vector<8x1xf32>
    %15 = vector.broadcast %14 : vector<8x1xf32> to vector<8x256xf32>
    %16 = arith.mulf %13, %15 : vector<8x256xf32>
    %c0_6 = arith.constant 0 : index
    %c0_7 = arith.constant 0 : index
    %17 = vector.load %arg4[%c0_6, %c0_7] : memref<8x1xf32, #tpu.memory_space<vmem>>, vector<8x1xf32>
    %18 = vector.broadcast %17 : vector<8x1xf32> to vector<8x256xf32>
    %19 = arith.addf %16, %18 : vector<8x256xf32>
    %cst_8 = arith.constant 0.000000e+00 : f32
    %20 = vector.broadcast %cst_8 : f32 to vector<8x256xf32>
    %21 = arith.maximumf %19, %20 : vector<8x256xf32>
    %c255_i32_9 = arith.constant 255 : i32
    %22 = tpu.dynamic_rotate %21 by %c255_i32_9 dim 1 : vector<8x256xf32>, i32 -> vector<8x256xf32>
    %c254_i32_10 = arith.constant 254 : i32
    %23 = tpu.dynamic_rotate %21 by %c254_i32_10 dim 1 : vector<8x256xf32>, i32 -> vector<8x256xf32>
    %c240_i32_11 = arith.constant 240 : i32
    %24 = tpu.dynamic_rotate %21 by %c240_i32_11 dim 1 : vector<8x256xf32>, i32 -> vector<8x256xf32>
    %c239_i32_12 = arith.constant 239 : i32
    %25 = tpu.dynamic_rotate %21 by %c239_i32_12 dim 1 : vector<8x256xf32>, i32 -> vector<8x256xf32>
    %c238_i32_13 = arith.constant 238 : i32
    %26 = tpu.dynamic_rotate %21 by %c238_i32_13 dim 1 : vector<8x256xf32>, i32 -> vector<8x256xf32>
    %c224_i32_14 = arith.constant 224 : i32
    %27 = tpu.dynamic_rotate %21 by %c224_i32_14 dim 1 : vector<8x256xf32>, i32 -> vector<8x256xf32>
    %c223_i32_15 = arith.constant 223 : i32
    %28 = tpu.dynamic_rotate %21 by %c223_i32_15 dim 1 : vector<8x256xf32>, i32 -> vector<8x256xf32>
    %c222_i32_16 = arith.constant 222 : i32
    %29 = tpu.dynamic_rotate %21 by %c222_i32_16 dim 1 : vector<8x256xf32>, i32 -> vector<8x256xf32>
    %30 = tpu.concatenate %21, %22, %23, %24, %25, %26, %27, %28, %29 in 0 : vector<8x256xf32>, vector<8x256xf32>, vector<8x256xf32>, vector<8x256xf32>, vector<8x256xf32>, vector<8x256xf32>, vector<8x256xf32>, vector<8x256xf32>, vector<8x256xf32> -> vector<72x256xf32>
    %31 = arith.truncf %30 : vector<72x256xf32> to vector<72x256xbf16>
    %c0_17 = arith.constant 0 : index
    %c0_18 = arith.constant 0 : index
    %32 = vector.load %arg5[%c0_17, %c0_18] : memref<16x72xbf16, #tpu.memory_space<vmem>>, vector<16x72xbf16>
    %cst_19 = arith.constant dense<0.000000e+00> : vector<16x256xf32>
    %33 = tpu.matmul %32, %31, %cst_19 {dimension_numbers = #tpu.dot_dimension_numbers<[1], [0], [0], [1], [0, 0, 1, 1], [], []>} : vector<16x72xbf16>, vector<72x256xbf16>, vector<16x256xf32> -> vector<16x256xf32>
    %c0_20 = arith.constant 0 : index
    %c0_21 = arith.constant 0 : index
    %34 = vector.load %arg6[%c0_20, %c0_21] : memref<16x1xf32, #tpu.memory_space<vmem>>, vector<16x1xf32>
    %35 = vector.broadcast %34 : vector<16x1xf32> to vector<16x256xf32>
    %36 = arith.mulf %33, %35 : vector<16x256xf32>
    %c0_22 = arith.constant 0 : index
    %c0_23 = arith.constant 0 : index
    %37 = vector.load %arg7[%c0_22, %c0_23] : memref<16x1xf32, #tpu.memory_space<vmem>>, vector<16x1xf32>
    %38 = vector.broadcast %37 : vector<16x1xf32> to vector<16x256xf32>
    %39 = arith.addf %36, %38 : vector<16x256xf32>
    %cst_24 = arith.constant 0.000000e+00 : f32
    %40 = vector.broadcast %cst_24 : f32 to vector<16x256xf32>
    %41 = arith.maximumf %39, %40 : vector<16x256xf32>
    %c255_i32_25 = arith.constant 255 : i32
    %42 = tpu.dynamic_rotate %41 by %c255_i32_25 dim 1 : vector<16x256xf32>, i32 -> vector<16x256xf32>
    %c254_i32_26 = arith.constant 254 : i32
    %43 = tpu.dynamic_rotate %41 by %c254_i32_26 dim 1 : vector<16x256xf32>, i32 -> vector<16x256xf32>
    %c240_i32_27 = arith.constant 240 : i32
    %44 = tpu.dynamic_rotate %41 by %c240_i32_27 dim 1 : vector<16x256xf32>, i32 -> vector<16x256xf32>
    %c239_i32_28 = arith.constant 239 : i32
    %45 = tpu.dynamic_rotate %41 by %c239_i32_28 dim 1 : vector<16x256xf32>, i32 -> vector<16x256xf32>
    %c238_i32_29 = arith.constant 238 : i32
    %46 = tpu.dynamic_rotate %41 by %c238_i32_29 dim 1 : vector<16x256xf32>, i32 -> vector<16x256xf32>
    %c224_i32_30 = arith.constant 224 : i32
    %47 = tpu.dynamic_rotate %41 by %c224_i32_30 dim 1 : vector<16x256xf32>, i32 -> vector<16x256xf32>
    %c223_i32_31 = arith.constant 223 : i32
    %48 = tpu.dynamic_rotate %41 by %c223_i32_31 dim 1 : vector<16x256xf32>, i32 -> vector<16x256xf32>
    %c222_i32_32 = arith.constant 222 : i32
    %49 = tpu.dynamic_rotate %41 by %c222_i32_32 dim 1 : vector<16x256xf32>, i32 -> vector<16x256xf32>
    %50 = tpu.concatenate %41, %42, %43, %44, %45, %46, %47, %48, %49 in 0 : vector<16x256xf32>, vector<16x256xf32>, vector<16x256xf32>, vector<16x256xf32>, vector<16x256xf32>, vector<16x256xf32>, vector<16x256xf32>, vector<16x256xf32>, vector<16x256xf32> -> vector<144x256xf32>
    %51 = arith.truncf %50 : vector<144x256xf32> to vector<144x256xbf16>
    %c0_33 = arith.constant 0 : index
    %c0_34 = arith.constant 0 : index
    %52 = vector.load %arg8[%c0_33, %c0_34] : memref<16x144xbf16, #tpu.memory_space<vmem>>, vector<16x144xbf16>
    %cst_35 = arith.constant dense<0.000000e+00> : vector<16x256xf32>
    %53 = tpu.matmul %52, %51, %cst_35 {dimension_numbers = #tpu.dot_dimension_numbers<[1], [0], [0], [1], [0, 0, 1, 1], [], []>} : vector<16x144xbf16>, vector<144x256xbf16>, vector<16x256xf32> -> vector<16x256xf32>
    %c0_36 = arith.constant 0 : index
    %c0_37 = arith.constant 0 : index
    %54 = vector.load %arg9[%c0_36, %c0_37] : memref<16x1xf32, #tpu.memory_space<vmem>>, vector<16x1xf32>
    %55 = vector.broadcast %54 : vector<16x1xf32> to vector<16x256xf32>
    %56 = arith.mulf %53, %55 : vector<16x256xf32>
    %c0_38 = arith.constant 0 : index
    %c0_39 = arith.constant 0 : index
    %57 = vector.load %arg10[%c0_38, %c0_39] : memref<16x1xf32, #tpu.memory_space<vmem>>, vector<16x1xf32>
    %58 = vector.broadcast %57 : vector<16x1xf32> to vector<16x256xf32>
    %59 = arith.addf %56, %58 : vector<16x256xf32>
    %cst_40 = arith.constant 0.000000e+00 : f32
    %60 = vector.broadcast %cst_40 : f32 to vector<16x256xf32>
    %61 = arith.maximumf %59, %60 : vector<16x256xf32>
    %c0_41 = arith.constant 0 : index
    %c0_42 = arith.constant 0 : index
    %c0_43 = arith.constant 0 : index
    %62 = vector.load %arg11[%c0_41, %c0_42, %c0_43] : memref<8x16x256xf32, #tpu.memory_space<vmem>>, vector<8x16x256xf32>
    %63 = vector.shape_cast %61 : vector<16x256xf32> to vector<1x16x256xf32>
    %64 = vector.broadcast %63 : vector<1x16x256xf32> to vector<8x16x256xf32>
    %65 = arith.mulf %62, %64 : vector<8x16x256xf32>
    %cst_44 = arith.constant dense<0.000000e+00> : vector<8x256xf32>
    %66 = vector.multi_reduction <add>, %65, %cst_44 [1] : vector<8x16x256xf32> to vector<8x256xf32>
    %c0_45 = arith.constant 0 : index
    %c0_46 = arith.constant 0 : index
    %67 = vector.load %arg12[%c0_45, %c0_46] : memref<256x1xf32, #tpu.memory_space<vmem>>, vector<256x1xf32>
    %cst_47 = arith.constant dense<0.000000e+00> : vector<8x1xf32>
    %68 = tpu.matmul %66, %67, %cst_47 {dimension_numbers = #tpu.dot_dimension_numbers<[1], [0], [0], [1], [0, 0, 1, 1], [], []>} : vector<8x256xf32>, vector<256x1xf32>, vector<8x1xf32> -> vector<8x1xf32>
    %c0_48 = arith.constant 0 : index
    %c0_49 = arith.constant 0 : index
    %69 = vector.load %arg13[%c0_48, %c0_49] : memref<8x1xf32, #tpu.memory_space<vmem>>, vector<8x1xf32>
    %70 = arith.addf %68, %69 : vector<8x1xf32>
    %c0_50 = arith.constant 0 : index
    %c0_51 = arith.constant 0 : index
    %c0_52 = arith.constant 0 : index
    %71 = vector.load %arg14[%c0_50, %c0_51, %c0_52] : memref<1x8x1xf32, #tpu.memory_space<vmem>>, vector<1x8x1xf32>
    %72 = vector.shape_cast %71 : vector<1x8x1xf32> to vector<8x1xf32>
    %73 = vector.shape_cast %70 : vector<8x1xf32> to vector<1x8x1xf32>
    tpu.vector_store %arg14[%c0_50, %c0_51, %c0_52], %73 {strides = array<i32>} : memref<1x8x1xf32, #tpu.memory_space<vmem>>, vector<1x8x1xf32>,
    return
  }
  func.func @transform_0(%arg0: i32) -> (i32, i32, i32) {
    %c0_i32 = arith.constant 0 : i32
    %c0_i32_0 = arith.constant 0 : i32
    %c0_i32_1 = arith.constant 0 : i32
    return %arg0, %c0_i32, %c0_i32_0 : i32, i32, i32
  }
  func.func @transform_1(%arg0: i32) -> (i32, i32) {
    %c0_i32 = arith.constant 0 : i32
    %c0_i32_0 = arith.constant 0 : i32
    %c0_i32_1 = arith.constant 0 : i32
    return %c0_i32, %c0_i32_0 : i32, i32
  }
  func.func @transform_2(%arg0: i32) -> (i32, i32) {
    %c0_i32 = arith.constant 0 : i32
    %c0_i32_0 = arith.constant 0 : i32
    %c0_i32_1 = arith.constant 0 : i32
    return %c0_i32, %c0_i32_0 : i32, i32
  }
  func.func @transform_3(%arg0: i32) -> (i32, i32) {
    %c0_i32 = arith.constant 0 : i32
    %c0_i32_0 = arith.constant 0 : i32
    %c0_i32_1 = arith.constant 0 : i32
    return %c0_i32, %c0_i32_0 : i32, i32
  }
  func.func @transform_4(%arg0: i32) -> (i32, i32) {
    %c0_i32 = arith.constant 0 : i32
    %c0_i32_0 = arith.constant 0 : i32
    %c0_i32_1 = arith.constant 0 : i32
    return %c0_i32, %c0_i32_0 : i32, i32
  }
  func.func @transform_5(%arg0: i32) -> (i32, i32) {
    %c0_i32 = arith.constant 0 : i32
    %c0_i32_0 = arith.constant 0 : i32
    %c0_i32_1 = arith.constant 0 : i32
    return %c0_i32, %c0_i32_0 : i32, i32
  }
  func.func @transform_6(%arg0: i32) -> (i32, i32) {
    %c0_i32 = arith.constant 0 : i32
    %c0_i32_0 = arith.constant 0 : i32
    %c0_i32_1 = arith.constant 0 : i32
    return %c0_i32, %c0_i32_0 : i32, i32
  }
  func.func @transform_7(%arg0: i32) -> (i32, i32) {
    %c0_i32 = arith.constant 0 : i32
    %c0_i32_0 = arith.constant 0 : i32
    %c0_i32_1 = arith.constant 0 : i32
    return %c0_i32, %c0_i32_0 : i32, i32
  }
  func.func @transform_8(%arg0: i32) -> (i32, i32) {
    %c0_i32 = arith.constant 0 : i32
    %c0_i32_0 = arith.constant 0 : i32
    %c0_i32_1 = arith.constant 0 : i32
    return %c0_i32, %c0_i32_0 : i32, i32
  }
  func.func @transform_9(%arg0: i32) -> (i32, i32) {
    %c0_i32 = arith.constant 0 : i32
    %c0_i32_0 = arith.constant 0 : i32
    %c0_i32_1 = arith.constant 0 : i32
    return %c0_i32, %c0_i32_0 : i32, i32
  }
  func.func @transform_10(%arg0: i32) -> (i32, i32, i32) {
    %c0_i32 = arith.constant 0 : i32
    %c0_i32_0 = arith.constant 0 : i32
    %c0_i32_1 = arith.constant 0 : i32
    %c0_i32_2 = arith.constant 0 : i32
    return %c0_i32, %c0_i32_0, %c0_i32_1 : i32, i32, i32
  }
  func.func @transform_11(%arg0: i32) -> (i32, i32) {
    %c0_i32 = arith.constant 0 : i32
    %c0_i32_0 = arith.constant 0 : i32
    %c0_i32_1 = arith.constant 0 : i32
    return %c0_i32, %c0_i32_0 : i32, i32
  }
  func.func @transform_12(%arg0: i32) -> (i32, i32) {
    %c0_i32 = arith.constant 0 : i32
    %c0_i32_0 = arith.constant 0 : i32
    %c0_i32_1 = arith.constant 0 : i32
    return %c0_i32, %c0_i32_0 : i32, i32
  }
  func.func @transform_13(%arg0: i32) -> (i32, i32, i32) {
    %c0_i32 = arith.constant 0 : i32
    %c0_i32_0 = arith.constant 0 : i32
    %c0_i32_1 = arith.constant 0 : i32
    return %arg0, %c0_i32, %c0_i32_0 : i32, i32, i32
  }
}

</mosaic_0001>

<llo_original>
// kernel: forward.1
$region0: #{forward.1}
  #allocation0 [shape = 'u32[]', space=smem, size = 0x4, offset = 0x4, fixed_abs, tag = 'smem constant byte address 0x4 - core index']
  #allocation1 [shape = 'u32[144,128]{1,0:T(1,128)}', space=vmem, size = 0x12000, scoped, tag = 'internal scratch']
  %s0 = inlined_call_operand.vmem [shape: f32[2,8,256], index: 0, kind: input, shape index: {}]
  %s1 = inlined_call_operand.vmem [shape: bf16[8,72], index: 1, kind: input, shape index: {}]
  %s2 = inlined_call_operand.vmem [shape: f32[8,1], index: 2, kind: input, shape index: {}]
  %s3 = inlined_call_operand.vmem [shape: f32[8,1], index: 3, kind: input, shape index: {}]
  %s4 = inlined_call_operand.vmem [shape: bf16[16,72], index: 4, kind: input, shape index: {}]
  %s5 = inlined_call_operand.vmem [shape: f32[16,1], index: 5, kind: input, shape index: {}]
  %s6 = inlined_call_operand.vmem [shape: f32[16,1], index: 6, kind: input, shape index: {}]
  %s7 = inlined_call_operand.vmem [shape: bf16[16,144], index: 7, kind: input, shape index: {}]
  %s8 = inlined_call_operand.vmem [shape: f32[16,1], index: 8, kind: input, shape index: {}]
  %s9 = inlined_call_operand.vmem [shape: f32[16,1], index: 9, kind: input, shape index: {}]
  %s10 = inlined_call_operand.vmem [shape: f32[8,16,256], index: 10, kind: input, shape index: {}]
  %s11 = inlined_call_operand.vmem [shape: f32[256,1], index: 11, kind: input, shape index: {}]
  %s12 = inlined_call_operand.vmem [shape: f32[8,1], index: 12, kind: input, shape index: {}]
  %s13 = inlined_call_operand.vmem [shape: f32[2,8,1], index: 13, kind: output, shape index: {}]
  %s14 = sld [smem:[#allocation0]]
  $region85: #{forward.1} parent=0
    _
  %s16 = ssub.s32 1, %s14
  %s17 = scalar_select 0, %s16, %s14
  loop: start=0, step=1, limit=4
  $region2: #{forward.1} parent=0 // loop_pre_header
    _
  $region3: #{forward.1} parent=0 // loop_header
    %s19 = sphi 0, %s23
    %p20 = scmp.ge.s32.totalorder %s19, 4
    %s29 = sphi 0, %s31
    %s32 = sphi 0, %s29
    %s33 = sphi 0, %s32
    %s49 = sphi 0, %s33
    %s53 = sphi 0, %s53
    %s55 = sphi 0, %s53
    %s56 = sphi 0, %s55
    %s70 = sphi 0, %s56
    %s74 = sphi 0, %s74
    %s76 = sphi 0, %s74
    %s77 = sphi 0, %s76
    %s91 = sphi 0, %s77
    %s95 = sphi 0, %s95
    %s97 = sphi 0, %s95
    %s98 = sphi 0, %s97
    %s112 = sphi 0, %s98
    %s116 = sphi 0, %s116
    %s118 = sphi 0, %s116
    %s119 = sphi 0, %s118
    %s133 = sphi 0, %s119
    %s137 = sphi 0, %s137
    %s139 = sphi 0, %s137
    %s140 = sphi 0, %s139
    %s154 = sphi 0, %s140
    %s158 = sphi 0, %s158
    %s160 = sphi 0, %s158
    %s161 = sphi 0, %s160
    %s175 = sphi 0, %s161
    %s179 = sphi 0, %s179
    %s181 = sphi 0, %s179
    %s182 = sphi 0, %s181
    %s196 = sphi 0, %s182
    %s200 = sphi 0, %s200
    %s202 = sphi 0, %s200
    %s203 = sphi 0, %s202
    %s217 = sphi 0, %s203
    %s221 = sphi 0, %s221
    %s223 = sphi 0, %s221
    %s224 = sphi 0, %s223
    %s238 = sphi 0, %s224
    %s242 = sphi 0, %s242
    %s244 = sphi 0, %s242
    %s245 = sphi 0, %s244
    %s259 = sphi 0, %s245
    %s263 = sphi 0, %s263
    %s265 = sphi 0, %s263
    %s266 = sphi 0, %s265
    %s280 = sphi 0, %s266
    %s284 = sphi 0, %s284
    %s286 = sphi 0, %s284
    %s287 = sphi 0, %s286
    %s301 = sphi 0, %s287
    %s307 = sphi 0, %s309
    %s310 = sphi 0, %s307
    %s311 = sphi 0, %s310
    %s327 = sphi 0, %s311
  $region4: #{forward.1} parent=0 // loop_header_branch
    %22 = sbr.rel (%p20) target = $region8
  $region5: #{forward.1} parent=0 // loop_body
    %s24 = ssub.s32 %s19, 1
    %s25 = ssub.s32 %s19, 2
    %s26 = sadd.s32 %s19, 1
    %s27 = ssub.s32 %s19, %s26
    %p28 = scmp.eq.s32.totalorder %s27, 0
    %s30 = sadd.s32 %s29, 1
    %s31 = scalar_select %p28, %s29, %s30
    %p34 = pneg %p28
    %p35 = scmp.eq.s32.totalorder %s19, 1
    %p36 = por %p34, %p35
    %p37 = scmp.ne.s32.totalorder %s29, %s32
    %p38 = scmp.eq.s32.totalorder %s19, 0
    %p39 = por %p37, %p38
    %p40 = scmp.ne.s32.totalorder %s29, %s32
    %p41 = scmp.eq.s32.totalorder %s24, 1
    %p42 = por %p40, %p41
    %p43 = scmp.ne.s32.totalorder %s32, %s33
    %p44 = scmp.eq.s32.totalorder %s24, 0
    %p45 = por %p43, %p44
    %p46 = scmp.ne.s32.totalorder %s32, %s33
    %p47 = scmp.eq.s32.totalorder %s25, 1
    %p48 = por %p46, %p47
    %p50 = scmp.ne.s32.totalorder %s33, %s49
    %p51 = scmp.eq.s32.totalorder %s25, 0
    %p52 = por %p50, %p51
    %s54 = sadd.s32 %s53, 1
    %p57 = scmp.eq.s32.totalorder %s19, 1
    %p58 = scmp.ne.s32.totalorder %s53, %s55
    %p59 = scmp.eq.s32.totalorder %s19, 0
    %p60 = por %p58, %p59
    %p61 = scmp.ne.s32.totalorder %s53, %s55
    %p62 = scmp.eq.s32.totalorder %s24, 1
    %p63 = por %p61, %p62
    %p64 = scmp.ne.s32.totalorder %s55, %s56
    %p65 = scmp.eq.s32.totalorder %s24, 0
    %p66 = por %p64, %p65
    %p67 = scmp.ne.s32.totalorder %s55, %s56
    %p68 = scmp.eq.s32.totalorder %s25, 1
    %p69 = por %p67, %p68
    %p71 = scmp.ne.s32.totalorder %s56, %s70
    %p72 = scmp.eq.s32.totalorder %s25, 0
    %p73 = por %p71, %p72
    %s75 = sadd.s32 %s74, 1
    %p78 = scmp.eq.s32.totalorder %s19, 1
    %p79 = scmp.ne.s32.totalorder %s74, %s76
    %p80 = scmp.eq.s32.totalorder %s19, 0
    %p81 = por %p79, %p80
    %p82 = scmp.ne.s32.totalorder %s74, %s76
    %p83 = scmp.eq.s32.totalorder %s24, 1
    %p84 = por %p82, %p83
    %p85 = scmp.ne.s32.totalorder %s76, %s77
    %p86 = scmp.eq.s32.totalorder %s24, 0
    %p87 = por %p85, %p86
    %p88 = scmp.ne.s32.totalorder %s76, %s77
    %p89 = scmp.eq.s32.totalorder %s25, 1
    %p90 = por %p88, %p89
    %p92 = scmp.ne.s32.totalorder %s77, %s91
    %p93 = scmp.eq.s32.totalorder %s25, 0
    %p94 = por %p92, %p93
    %s96 = sadd.s32 %s95, 1
    %p99 = scmp.eq.s32.totalorder %s19, 1
    %p100 = scmp.ne.s32.totalorder %s95, %s97
    %p101 = scmp.eq.s32.totalorder %s19, 0
    %p102 = por %p100, %p101
    %p103 = scmp.ne.s32.totalorder %s95, %s97
    %p104 = scmp.eq.s32.totalorder %s24, 1
    %p105 = por %p103, %p104
    %p106 = scmp.ne.s32.totalorder %s97, %s98
    %p107 = scmp.eq.s32.totalorder %s24, 0
    %p108 = por %p106, %p107
    %p109 = scmp.ne.s32.totalorder %s97, %s98
    %p110 = scmp.eq.s32.totalorder %s25, 1
    %p111 = por %p109, %p110
    %p113 = scmp.ne.s32.totalorder %s98, %s112
    %p114 = scmp.eq.s32.totalorder %s25, 0
    %p115 = por %p113, %p114
    %s117 = sadd.s32 %s116, 1
    %p120 = scmp.eq.s32.totalorder %s19, 1
    %p121 = scmp.ne.s32.totalorder %s116, %s118
    %p122 = scmp.eq.s32.totalorder %s19, 0
    %p123 = por %p121, %p122
    %p124 = scmp.ne.s32.totalorder %s116, %s118
    %p125 = scmp.eq.s32.totalorder %s24, 1
    %p126 = por %p124, %p125
    %p127 = scmp.ne.s32.totalorder %s118, %s119
    %p128 = scmp.eq.s32.totalorder %s24, 0
    %p129 = por %p127, %p128
    %p130 = scmp.ne.s32.totalorder %s118, %s119
    %p131 = scmp.eq.s32.totalorder %s25, 1
    %p132 = por %p130, %p131
    %p134 = scmp.ne.s32.totalorder %s119, %s133
    %p135 = scmp.eq.s32.totalorder %s25, 0
    %p136 = por %p134, %p135
    %s138 = sadd.s32 %s137, 1
    %p141 = scmp.eq.s32.totalorder %s19, 1
    %p142 = scmp.ne.s32.totalorder %s137, %s139
    %p143 = scmp.eq.s32.totalorder %s19, 0
    %p144 = por %p142, %p143
    %p145 = scmp.ne.s32.totalorder %s137, %s139
    %p146 = scmp.eq.s32.totalorder %s24, 1
    %p147 = por %p145, %p146
    %p148 = scmp.ne.s32.totalorder %s139, %s140
    %p149 = scmp.eq.s32.totalorder %s24, 0
    %p150 = por %p148, %p149
    %p151 = scmp.ne.s32.totalorder %s139, %s140
    %p152 = scmp.eq.s32.totalorder %s25, 1
    %p153 = por %p151, %p152
    %p155 = scmp.ne.s32.totalorder %s140, %s154
    %p156 = scmp.eq.s32.totalorder %s25, 0
    %p157 = por %p155, %p156
    %s159 = sadd.s32 %s158, 1
    %p162 = scmp.eq.s32.totalorder %s19, 1
    %p163 = scmp.ne.s32.totalorder %s158, %s160
    %p164 = scmp.eq.s32.totalorder %s19, 0
    %p165 = por %p163, %p164
    %p166 = scmp.ne.s32.totalorder %s158, %s160
    %p167 = scmp.eq.s32.totalorder %s24, 1
    %p168 = por %p166, %p167
    %p169 = scmp.ne.s32.totalorder %s160, %s161
    %p170 = scmp.eq.s32.totalorder %s24, 0
    %p171 = por %p169, %p170
    %p172 = scmp.ne.s32.totalorder %s160, %s161
    %p173 = scmp.eq.s32.totalorder %s25, 1
    %p174 = por %p172, %p173
    %p176 = scmp.ne.s32.totalorder %s161, %s175
    %p177 = scmp.eq.s32.totalorder %s25, 0
    %p178 = por %p176, %p177
    %s180 = sadd.s32 %s179, 1
    %p183 = scmp.eq.s32.totalorder %s19, 1
    %p184 = scmp.ne.s32.totalorder %s179, %s181
    %p185 = scmp.eq.s32.totalorder %s19, 0
    %p186 = por %p184, %p185
    %p187 = scmp.ne.s32.totalorder %s179, %s181
    %p188 = scmp.eq.s32.totalorder %s24, 1
    %p189 = por %p187, %p188
    %p190 = scmp.ne.s32.totalorder %s181, %s182
    %p191 = scmp.eq.s32.totalorder %s24, 0
    %p192 = por %p190, %p191
    %p193 = scmp.ne.s32.totalorder %s181, %s182
    %p194 = scmp.eq.s32.totalorder %s25, 1
    %p195 = por %p193, %p194
    %p197 = scmp.ne.s32.totalorder %s182, %s196
    %p198 = scmp.eq.s32.totalorder %s25, 0
    %p199 = por %p197, %p198
    %s201 = sadd.s32 %s200, 1
    %p204 = scmp.eq.s32.totalorder %s19, 1
    %p205 = scmp.ne.s32.totalorder %s200, %s202
    %p206 = scmp.eq.s32.totalorder %s19, 0
    %p207 = por %p205, %p206
    %p208 = scmp.ne.s32.totalorder %s200, %s202
    %p209 = scmp.eq.s32.totalorder %s24, 1
    %p210 = por %p208, %p209
    %p211 = scmp.ne.s32.totalorder %s202, %s203
    %p212 = scmp.eq.s32.totalorder %s24, 0
    %p213 = por %p211, %p212
    %p214 = scmp.ne.s32.totalorder %s202, %s203
    %p215 = scmp.eq.s32.totalorder %s25, 1
    %p216 = por %p214, %p215
    %p218 = scmp.ne.s32.totalorder %s203, %s217
    %p219 = scmp.eq.s32.totalorder %s25, 0
    %p220 = por %p218, %p219
    %s222 = sadd.s32 %s221, 1
    %p225 = scmp.eq.s32.totalorder %s19, 1
    %p226 = scmp.ne.s32.totalorder %s221, %s223
    %p227 = scmp.eq.s32.totalorder %s19, 0
    %p228 = por %p226, %p227
    %p229 = scmp.ne.s32.totalorder %s221, %s223
    %p230 = scmp.eq.s32.totalorder %s24, 1
    %p231 = por %p229, %p230
    %p232 = scmp.ne.s32.totalorder %s223, %s224
    %p233 = scmp.eq.s32.totalorder %s24, 0
    %p234 = por %p232, %p233
    %p235 = scmp.ne.s32.totalorder %s223, %s224
    %p236 = scmp.eq.s32.totalorder %s25, 1
    %p237 = por %p235, %p236
    %p239 = scmp.ne.s32.totalorder %s224, %s238
    %p240 = scmp.eq.s32.totalorder %s25, 0
    %p241 = por %p239, %p240
    %s243 = sadd.s32 %s242, 1
    %p246 = scmp.eq.s32.totalorder %s19, 1
    %p247 = scmp.ne.s32.totalorder %s242, %s244
    %p248 = scmp.eq.s32.totalorder %s19, 0
    %p249 = por %p247, %p248
    %p250 = scmp.ne.s32.totalorder %s242, %s244
    %p251 = scmp.eq.s32.totalorder %s24, 1
    %p252 = por %p250, %p251
    %p253 = scmp.ne.s32.totalorder %s244, %s245
    %p254 = scmp.eq.s32.totalorder %s24, 0
    %p255 = por %p253, %p254
    %p256 = scmp.ne.s32.totalorder %s244, %s245
    %p257 = scmp.eq.s32.totalorder %s25, 1
    %p258 = por %p256, %p257
    %p260 = scmp.ne.s32.totalorder %s245, %s259
    %p261 = scmp.eq.s32.totalorder %s25, 0
    %p262 = por %p260, %p261
    %s264 = sadd.s32 %s263, 1
    %p267 = scmp.eq.s32.totalorder %s19, 1
    %p268 = scmp.ne.s32.totalorder %s263, %s265
    %p269 = scmp.eq.s32.totalorder %s19, 0
    %p270 = por %p268, %p269
    %p271 = scmp.ne.s32.totalorder %s263, %s265
    %p272 = scmp.eq.s32.totalorder %s24, 1
    %p273 = por %p271, %p272
    %p274 = scmp.ne.s32.totalorder %s265, %s266
    %p275 = scmp.eq.s32.totalorder %s24, 0
    %p276 = por %p274, %p275
    %p277 = scmp.ne.s32.totalorder %s265, %s266
    %p278 = scmp.eq.s32.totalorder %s25, 1
    %p279 = por %p277, %p278
    %p281 = scmp.ne.s32.totalorder %s266, %s280
    %p282 = scmp.eq.s32.totalorder %s25, 0
    %p283 = por %p281, %p282
    %s285 = sadd.s32 %s284, 1
    %p288 = scmp.eq.s32.totalorder %s19, 1
    %p289 = scmp.ne.s32.totalorder %s284, %s286
    %p290 = scmp.eq.s32.totalorder %s19, 0
    %p291 = por %p289, %p290
    %p292 = scmp.ne.s32.totalorder %s284, %s286
    %p293 = scmp.eq.s32.totalorder %s24, 1
    %p294 = por %p292, %p293
    %p295 = scmp.ne.s32.totalorder %s286, %s287
    %p296 = scmp.eq.s32.totalorder %s24, 0
    %p297 = por %p295, %p296
    %p298 = scmp.ne.s32.totalorder %s286, %s287
    %p299 = scmp.eq.s32.totalorder %s25, 1
    %p300 = por %p298, %p299
    %p302 = scmp.ne.s32.totalorder %s287, %s301
    %p303 = scmp.eq.s32.totalorder %s25, 0
    %p304 = por %p302, %p303
    %s305 = ssub.s32 %s19, %s26
    %p306 = scmp.eq.s32.totalorder %s305, 0
    %s308 = sadd.s32 %s307, 1
    %s309 = scalar_select %p306, %s307, %s308
    %p312 = pneg %p306
    %p313 = scmp.eq.s32.totalorder %s19, 1
    %p314 = por %p312, %p313
    %p315 = scmp.ne.s32.totalorder %s307, %s310
    %p316 = scmp.eq.s32.totalorder %s19, 0
    %p317 = por %p315, %p316
    %p318 = scmp.ne.s32.totalorder %s307, %s310
    %p319 = scmp.eq.s32.totalorder %s24, 1
    %p320 = por %p318, %p319
    %p321 = scmp.ne.s32.totalorder %s310, %s311
    %p322 = scmp.eq.s32.totalorder %s24, 0
    %p323 = por %p321, %p322
    %p324 = scmp.ne.s32.totalorder %s310, %s311
    %p325 = scmp.eq.s32.totalorder %s25, 1
    %p326 = por %p324, %p325
    %p328 = scmp.ne.s32.totalorder %s311, %s327
    %p329 = scmp.eq.s32.totalorder %s25, 0
    %p330 = por %p328, %p329
    %p331 = scmp.le.s32.totalorder 1, %s19
    %p332 = scmp.lt.s32.totalorder %s19, 3
    %p333 = pnand %p331, %p332
    %p334 = pneg %p333
    // Predicated region
    $region9: #{forward.1} parent=5 // pred_check
      _
    $region10: #{forward.1} parent=5 // pred_check_branch
      %336 = sbr.rel (%p333) target = $region12
    $region11: #{forward.1} parent=5 // pred_region
      %s337 = ssub.s32 %s19, 1
      // Predicated region
      $region13: #{forward.1} parent=11 // pred_check
        %p338 = pneg %p66
      $region14: #{forward.1} parent=11 // pred_check_branch
        %340 = sbr.rel (%p338) target = $region16
      $region15: #{forward.1} parent=11 // pred_region
        _
      $region16: #{forward.1} parent=11 // pred_fallthru
        _
      // Predicated region
      $region17: #{forward.1} parent=11 // pred_check
        %p341 = pneg %p87
      $region18: #{forward.1} parent=11 // pred_check_branch
        %343 = sbr.rel (%p341) target = $region20
      $region19: #{forward.1} parent=11 // pred_region
        _
      $region20: #{forward.1} parent=11 // pred_fallthru
        _
      // Predicated region
      $region21: #{forward.1} parent=11 // pred_check
        %p344 = pneg %p108
      $region22: #{forward.1} parent=11 // pred_check_branch
        %346 = sbr.rel (%p344) target = $region24
      $region23: #{forward.1} parent=11 // pred_region
        _
      $region24: #{forward.1} parent=11 // pred_fallthru
        _
      // Predicated region
      $region25: #{forward.1} parent=11 // pred_check
        %p347 = pneg %p129
      $region26: #{forward.1} parent=11 // pred_check_branch
        %349 = sbr.rel (%p347) target = $region28
      $region27: #{forward.1} parent=11 // pred_region
        _
      $region28: #{forward.1} parent=11 // pred_fallthru
        _
      // Predicated region
      $region29: #{forward.1} parent=11 // pred_check
        %p350 = pneg %p150
      $region30: #{forward.1} parent=11 // pred_check_branch
        %352 = sbr.rel (%p350) target = $region32
      $region31: #{forward.1} parent=11 // pred_region
        _
      $region32: #{forward.1} parent=11 // pred_fallthru
        _
      // Predicated region
      $region33: #{forward.1} parent=11 // pred_check
        %p353 = pneg %p171
      $region34: #{forward.1} parent=11 // pred_check_branch
        %355 = sbr.rel (%p353) target = $region36
      $region35: #{forward.1} parent=11 // pred_region
        _
      $region36: #{forward.1} parent=11 // pred_fallthru
        _
      // Predicated region
      $region37: #{forward.1} parent=11 // pred_check
        %p356 = pneg %p192
      $region38: #{forward.1} parent=11 // pred_check_branch
        %358 = sbr.rel (%p356) target = $region40
      $region39: #{forward.1} parent=11 // pred_region
        _
      $region40: #{forward.1} parent=11 // pred_fallthru
        _
      // Predicated region
      $region41: #{forward.1} parent=11 // pred_check
        %p359 = pneg %p213
      $region42: #{forward.1} parent=11 // pred_check_branch
        %361 = sbr.rel (%p359) target = $region44
      $region43: #{forward.1} parent=11 // pred_region
        _
      $region44: #{forward.1} parent=11 // pred_fallthru
        _
      // Predicated region
      $region45: #{forward.1} parent=11 // pred_check
        %p362 = pneg %p234
      $region46: #{forward.1} parent=11 // pred_check_branch
        %364 = sbr.rel (%p362) target = $region48
      $region47: #{forward.1} parent=11 // pred_region
        _
      $region48: #{forward.1} parent=11 // pred_fallthru
        _
      // Predicated region
      $region49: #{forward.1} parent=11 // pred_check
        %p365 = pneg %p255
      $region50: #{forward.1} parent=11 // pred_check_branch
        %367 = sbr.rel (%p365) target = $region52
      $region51: #{forward.1} parent=11 // pred_region
        _
      $region52: #{forward.1} parent=11 // pred_fallthru
        _
      // Predicated region
      $region53: #{forward.1} parent=11 // pred_check
        %p368 = pneg %p276
      $region54: #{forward.1} parent=11 // pred_check_branch
        %370 = sbr.rel (%p368) target = $region56
      $region55: #{forward.1} parent=11 // pred_region
        _
      $region56: #{forward.1} parent=11 // pred_fallthru
        _
      // Predicated region
      $region57: #{forward.1} parent=11 // pred_check
        %p371 = pneg %p297
      $region58: #{forward.1} parent=11 // pred_check_branch
        %373 = sbr.rel (%p371) target = $region60
      $region59: #{forward.1} parent=11 // pred_region
        _
      $region60: #{forward.1} parent=11 // pred_fallthru
        _
    $region12: #{forward.1} parent=5 // pred_fallthru
      _
    %p374 = scmp.lt.s32.totalorder %s19, 2
    // Predicated region
    $region61: #{forward.1} parent=5 // pred_check
      %p375 = pneg %p374
    $region62: #{forward.1} parent=5 // pred_check_branch
      %377 = sbr.rel (%p375) target = $region64
    $region63: #{forward.1} parent=5 // pred_region
      // Predicated region
      $region65: #{forward.1} parent=63 // pred_check
        %p378 = pneg %p39
      $region66: #{forward.1} parent=63 // pred_check_branch
        %380 = sbr.rel (%p378) target = $region68
      $region67: #{forward.1} parent=63 // pred_region
        %p381 = scmp.lt.s32.totalorder %s19, 1
        %s382 = scalar_select %p381, %s19, 1
        %s383 = smul.addr %s382, 2
        %s384 = smul.addr %s383, 8
        %s385 = scalar_lea.vmem %s0, %s384
      $region68: #{forward.1} parent=63 // pred_fallthru
        _
    $region64: #{forward.1} parent=5 // pred_fallthru
      _
    %p386 = scmp.le.s32.totalorder 1, %s19
    %p387 = scmp.lt.s32.totalorder %s19, 3
    %p388 = pnand %p386, %p387
    %p389 = pneg %p388
    // Predicated region
    $region69: #{forward.1} parent=5 // pred_check
      _
    $region70: #{forward.1} parent=5 // pred_check_branch
      %391 = sbr.rel (%p388) target = $region72
    $region71: #{forward.1} parent=5 // pred_region
      %s392 = ssub.s32 %s19, 1
      %p393 = scmp.lt.s32.totalorder %s24, 1
      %s394 = scalar_select %p393, %s24, 1
      %s395 = smul.addr %s394, 2
      %s396 = smul.addr %s395, 8
      %s397 = scalar_lea.vmem %s0, %s396
      %p398 = pneg %p45
      %p399 = pneg %p42
      %p400 = pneg %p66
      %p401 = pneg %p63
      %p402 = pneg %p87
      %p403 = pneg %p84
      %p404 = pneg %p108
      %p405 = pneg %p105
      %p406 = pneg %p129
      %p407 = pneg %p126
      %p408 = pneg %p150
      %p409 = pneg %p147
      %p410 = pneg %p171
      %p411 = pneg %p168
      %p412 = pneg %p192
      %p413 = pneg %p189
      %p414 = pneg %p213
      %p415 = pneg %p210
      %p416 = pneg %p234
      %p417 = pneg %p231
      %p418 = pneg %p255
      %p419 = pneg %p252
      %p420 = pneg %p276
      %p421 = pneg %p273
      %p422 = pneg %p297
      %p423 = pneg %p294
      %p424 = pneg %p323
      %p425 = pneg %p320
      %p426 = scmp.lt.s32.totalorder %s24, 1
      %s427 = scalar_select %p426, %s24, 1
      %s428 = smul.addr %s427, 8
      %s429 = scalar_lea.vmem %s13, %s428
      %p430 = scmp.lt.s32.totalorder %s24, 1
      %s431 = scalar_select %p430, %s24, 1
      %s432 = smul.addr %s431, 2
      %s433 = smul.addr %s432, 8
      %s434 = scalar_lea.vmem %s0, %s433
      %p435 = scmp.lt.s32.totalorder %s24, 1
      %s436 = scalar_select %p435, %s24, 1
      %s437 = smul.addr %s436, 8
      %s438 = scalar_lea.vmem %s13, %s437
      %v440 = vld [vmem:[%s434] sm:$0xff]
      %v441 = vld [vmem:[%s434 + $0x8] sm:$0xff]
      %442 = vrot.lane.b32.xlu0 %v440, 127
      %v443 = vpop.permute.xlu0 %442
      %444 = vrot.lane.b32.xlu0 %v441, 127
      %v445 = vpop.permute.xlu0 %444
      %v446 = vlaneseq
      %v447 = vand.u32 %v446, 127
      %vm448 = vcmp.lt.s32.totalorder %v447, 127
      %v449 = vsel %vm448, %v443, %v445
      %v450 = vsel %vm448, %v445, %v443
      %451 = vrot.lane.b32.xlu0 %v440, 126
      %v452 = vpop.permute.xlu0 %451
      %453 = vrot.lane.b32.xlu0 %v441, 126
      %v454 = vpop.permute.xlu0 %453
      %vm455 = vcmp.lt.s32.totalorder %v447, 126
      %v456 = vsel %vm455, %v452, %v454
      %v457 = vsel %vm455, %v454, %v452
      %458 = vrot.lane.b32.xlu0 %v440, 112
      %v459 = vpop.permute.xlu0 %458
      %460 = vrot.lane.b32.xlu0 %v441, 112
      %v461 = vpop.permute.xlu0 %460
      %vm462 = vcmp.lt.s32.totalorder %v447, 112
      %v463 = vsel %vm462, %v459, %v461
      %v464 = vsel %vm462, %v461, %v459
      %465 = vrot.lane.b32.xlu0 %v440, 111
      %v466 = vpop.permute.xlu0 %465
      %467 = vrot.lane.b32.xlu0 %v441, 111
      %v468 = vpop.permute.xlu0 %467
      %vm469 = vcmp.lt.s32.totalorder %v447, 111
      %v470 = vsel %vm469, %v466, %v468
      %v471 = vsel %vm469, %v468, %v466
      %472 = vrot.lane.b32.xlu0 %v440, 110
      %v473 = vpop.permute.xlu0 %472
      %474 = vrot.lane.b32.xlu0 %v441, 110
      %v475 = vpop.permute.xlu0 %474
      %vm476 = vcmp.lt.s32.totalorder %v447, 110
      %v477 = vsel %vm476, %v473, %v475
      %v478 = vsel %vm476, %v475, %v473
      %479 = vrot.lane.b32.xlu0 %v440, 96
      %v480 = vpop.permute.xlu0 %479
      %481 = vrot.lane.b32.xlu0 %v441, 96
      %v482 = vpop.permute.xlu0 %481
      %vm483 = vcmp.lt.s32.totalorder %v447, 96
      %v484 = vsel %vm483, %v480, %v482
      %v485 = vsel %vm483, %v482, %v480
      %486 = vrot.lane.b32.xlu0 %v440, 95
      %v487 = vpop.permute.xlu0 %486
      %488 = vrot.lane.b32.xlu0 %v441, 95
      %v489 = vpop.permute.xlu0 %488
      %vm490 = vcmp.lt.s32.totalorder %v447, 95
      %v491 = vsel %vm490, %v487, %v489
      %v492 = vsel %vm490, %v489, %v487
      %493 = vrot.lane.b32.xlu0 %v440, 94
      %v494 = vpop.permute.xlu0 %493
      %495 = vrot.lane.b32.xlu0 %v441, 94
      %v496 = vpop.permute.xlu0 %495
      %vm497 = vcmp.lt.s32.totalorder %v447, 94
      %v498 = vsel %vm497, %v494, %v496
      %v499 = vsel %vm497, %v496, %v494
      %v500 = vpack.c.bf16 %v449, %v440
      %v501 = vpack.c.bf16 %v450, %v441
      %v502 = vpack.c.bf16 %v463, %v456
      %v503 = vpack.c.bf16 %v464, %v457
      %v504 = vpack.c.bf16 %v477, %v470
      %v505 = vpack.c.bf16 %v478, %v471
      %v506 = vpack.c.bf16 %v491, %v484
      %v507 = vpack.c.bf16 %v492, %v485
      %v508 = vpack.c.bf16 %v498, %v498
      %v509 = vpack.c.bf16 %v499, %v499
      %v510 = vld [vmem:[%s1] sm:$0xf]
      %vm511 = vcmask 588800
      %v513 = vsel %vm511, %v510, 0
      %vm515 = vcmask 1043456
      %v517 = vsel %vm515, %v508, 0
      %v520 = vsel %vm515, %v509, 0
      %522 = vmatprep.subr.bf16.mxu0 %v501
      %523 = vmatpush1.bf16.msra.mxu0 %v500
      %524 = vmatprep.subr.bf16.mxu0 %v503
      %525 = vmatpush1.bf16.msra.mxu0 %v502
      %526 = vmatprep.subr.bf16.mxu0 %v505
      %527 = vmatpush1.bf16.msra.mxu0 %v504
      %528 = vmatprep.subr.bf16.mxu0 %v507
      %529 = vmatpush1.bf16.msra.mxu0 %v506
      %530 = vmatprep.subr.bf16.mxu0 %v520
      %531 = vmatpush1.bf16.msra.mxu0 %v517
      %532 = vmatprep.subr.bf16.mxu0 0
      %533 = vmatpush1.bf16.msra.mxu0 0
      %534 = vmatprep.subr.bf16.mxu0 0
      %535 = vmatpush1.bf16.msra.mxu0 0
      %536 = vmatprep.subr.bf16.mxu0 0
      %537 = vmatpush1.bf16.msra.mxu0 0
      %538 = vmatprep.subr.bf16.mxu0 0
      %539 = vmatpush1.bf16.msra.mxu0 0
      %540 = vmatprep.subr.bf16.mxu0 0
      %541 = vmatpush1.bf16.msra.mxu0 0
      %542 = vmatprep.subr.bf16.mxu0 0
      %543 = vmatpush1.bf16.msra.mxu0 0
      %544 = vmatprep.subr.bf16.mxu0 0
      %545 = vmatpush1.bf16.msra.mxu0 0
      %546 = vmatprep.subr.bf16.mxu0 0
      %547 = vmatpush1.bf16.msra.mxu0 0
      %548 = vmatprep.subr.bf16.mxu0 0
      %549 = vmatpush1.bf16.msra.mxu0 0
      %550 = vmatprep.subr.bf16.mxu0 0
      %551 = vmatpush1.bf16.msra.mxu0 0
      %552 = vmatprep.subr.bf16.mxu0 0
      %553 = vmatpush1.bf16.msra.mxu0 0
      %554 = vmatprep.mubr.bf16.mxu0 0
      %555 = vmatmul.mubr.bf16.gmra.mrb[0].mxu0 %v513
      %v556 = vpop.f32.mrb[0].mxu0
      %v557 = vadd.f32 0.0, %v556
      %v558 = vpop.f32.mrb[0].mxu0
      %v559 = vadd.f32 0.0, %v558
      %v560 = vpop.f32.mrb[0].mxu0
      %v561 = vpop.f32.mrb[0].mxu0
      %562 = vdwg.mxu0
      %v563 = vld [vmem:[%s2] sm:$0xff]
      %565 = vset.pattern.permute.xlu0 0
      %566 = vperm.xlu0 %565, %v563
      %v567 = vpop.permute.xlu0 %566
      %v569 = vmul.f32 %v557, %v567
      %v570 = vmul.f32 %v559, %v567
      %v571 = vld [vmem:[%s3] sm:$0xff]
      %573 = vset.pattern.permute.xlu0 0
      %574 = vperm.xlu0 %573, %v571
      %v575 = vpop.permute.xlu0 %574
      %v577 = vadd.f32 %v569, %v575
      %v578 = vadd.f32 %v570, %v575
      %v579 = vmax.f32 %v577, 0.0
      %v580 = vmax.f32 %v578, 0.0
      %581 = vrot.lane.b32.xlu0 %v579, 127
      %v582 = vpop.permute.xlu0 %581
      %583 = vrot.lane.b32.xlu0 %v580, 127
      %v584 = vpop.permute.xlu0 %583
      %v585 = vsel %vm448, %v582, %v584
      %v586 = vsel %vm448, %v584, %v582
      %587 = vrot.lane.b32.xlu0 %v579, 126
      %v588 = vpop.permute.xlu0 %587
      %589 = vrot.lane.b32.xlu0 %v580, 126
      %v590 = vpop.permute.xlu0 %589
      %v591 = vsel %vm455, %v588, %v590
      %v592 = vsel %vm455, %v590, %v588
      %593 = vrot.lane.b32.xlu0 %v579, 112
      %v594 = vpop.permute.xlu0 %593
      %595 = vrot.lane.b32.xlu0 %v580, 112
      %v596 = vpop.permute.xlu0 %595
      %v597 = vsel %vm462, %v594, %v596
      %v598 = vsel %vm462, %v596, %v594
      %599 = vrot.lane.b32.xlu0 %v579, 111
      %v600 = vpop.permute.xlu0 %599
      %601 = vrot.lane.b32.xlu0 %v580, 111
      %v602 = vpop.permute.xlu0 %601
      %v603 = vsel %vm469, %v600, %v602
      %v604 = vsel %vm469, %v602, %v600
      %605 = vrot.lane.b32.xlu0 %v579, 110
      %v606 = vpop.permute.xlu0 %605
      %607 = vrot.lane.b32.xlu0 %v580, 110
      %v608 = vpop.permute.xlu0 %607
      %v609 = vsel %vm476, %v606, %v608
      %v610 = vsel %vm476, %v608, %v606
      %611 = vrot.lane.b32.xlu0 %v579, 96
      %v612 = vpop.permute.xlu0 %611
      %613 = vrot.lane.b32.xlu0 %v580, 96
      %v614 = vpop.permute.xlu0 %613
      %v615 = vsel %vm483, %v612, %v614
      %v616 = vsel %vm483, %v614, %v612
      %617 = vrot.lane.b32.xlu0 %v579, 95
      %v618 = vpop.permute.xlu0 %617
      %619 = vrot.lane.b32.xlu0 %v580, 95
      %v620 = vpop.permute.xlu0 %619
      %v621 = vsel %vm490, %v618, %v620
      %v622 = vsel %vm490, %v620, %v618
      %623 = vrot.lane.b32.xlu0 %v579, 94
      %v624 = vpop.permute.xlu0 %623
      %625 = vrot.lane.b32.xlu0 %v580, 94
      %v626 = vpop.permute.xlu0 %625
      %v627 = vsel %vm497, %v624, %v626
      %v628 = vsel %vm497, %v626, %v624
      %v629 = vpack.c.bf16 %v585, %v579
      %v630 = vpack.c.bf16 %v586, %v580
      %v631 = vpack.c.bf16 %v597, %v591
      %v632 = vpack.c.bf16 %v598, %v592
      %v633 = vpack.c.bf16 %v609, %v603
      %v634 = vpack.c.bf16 %v610, %v604
      %v635 = vpack.c.bf16 %v621, %v615
      %v636 = vpack.c.bf16 %v622, %v616
      %v637 = vpack.c.bf16 %v627, %v627
      %v638 = vpack.c.bf16 %v628, %v628
      %v639 = vld [vmem:[%s4] sm:$0xf]
      %v640 = vld [vmem:[%s4 + $0x4] sm:$0xf]
      %v643 = vunpack.c.l.b16 %v639
      %v644 = vunpack.c.l.b16 %v640
      %v645 = vpack.c.b16 %v644, %v643
      %v647 = vsel %vm511, %v645, 0
      %v650 = vsel %vm515, %v637, 0
      %v653 = vsel %vm515, %v638, 0
      %655 = vmatprep.subr.bf16.mxu0 %v630
      %656 = vmatpush1.bf16.msra.mxu0 %v629
      %657 = vmatprep.subr.bf16.mxu0 %v632
      %658 = vmatpush1.bf16.msra.mxu0 %v631
      %659 = vmatprep.subr.bf16.mxu0 %v634
      %660 = vmatpush1.bf16.msra.mxu0 %v633
      %661 = vmatprep.subr.bf16.mxu0 %v636
      %662 = vmatpush1.bf16.msra.mxu0 %v635
      %663 = vmatprep.subr.bf16.mxu0 %v653
      %664 = vmatpush1.bf16.msra.mxu0 %v650
      %665 = vmatprep.subr.bf16.mxu0 0
      %666 = vmatpush1.bf16.msra.mxu0 0
      %667 = vmatprep.subr.bf16.mxu0 0
      %668 = vmatpush1.bf16.msra.mxu0 0
      %669 = vmatprep.subr.bf16.mxu0 0
      %670 = vmatpush1.bf16.msra.mxu0 0
      %671 = vmatprep.subr.bf16.mxu0 0
      %672 = vmatpush1.bf16.msra.mxu0 0
      %673 = vmatprep.subr.bf16.mxu0 0
      %674 = vmatpush1.bf16.msra.mxu0 0
      %675 = vmatprep.subr.bf16.mxu0 0
      %676 = vmatpush1.bf16.msra.mxu0 0
      %677 = vmatprep.subr.bf16.mxu0 0
      %678 = vmatpush1.bf16.msra.mxu0 0
      %679 = vmatprep.subr.bf16.mxu0 0
      %680 = vmatpush1.bf16.msra.mxu0 0
      %681 = vmatprep.subr.bf16.mxu0 0
      %682 = vmatpush1.bf16.msra.mxu0 0
      %683 = vmatprep.subr.bf16.mxu0 0
      %684 = vmatpush1.bf16.msra.mxu0 0
      %685 = vmatprep.subr.bf16.mxu0 0
      %686 = vmatpush1.bf16.msra.mxu0 0
      %687 = vmatprep.mubr.bf16.mxu0 0
      %688 = vmatmul.mubr.bf16.gmra.mrb[0].mxu0 %v647
      %v689 = vpop.f32.mrb[0].mxu0
      %v690 = vadd.f32 0.0, %v689
      %v691 = vpop.f32.mrb[0].mxu0
      %v692 = vadd.f32 0.0, %v691
      %v693 = vpop.f32.mrb[0].mxu0
      %v694 = vadd.f32 0.0, %v693
      %v695 = vpop.f32.mrb[0].mxu0
      %v696 = vadd.f32 0.0, %v695
      %697 = vdwg.mxu0
      %v698 = vld [vmem:[%s5] sm:$0xff]
      %v699 = vld [vmem:[%s5 + $0x8] sm:$0xff]
      %701 = vset.pattern.permute.xlu0 0
      %702 = vperm.xlu0 %701, %v698
      %v703 = vpop.permute.xlu0 %702
      %706 = vset.pattern.permute.xlu0 0
      %707 = vperm.xlu0 %706, %v699
      %v708 = vpop.permute.xlu0 %707
      %v710 = vmul.f32 %v690, %v703
      %v711 = vmul.f32 %v692, %v703
      %v712 = vmul.f32 %v694, %v708
      %v713 = vmul.f32 %v696, %v708
      %v714 = vld [vmem:[%s6] sm:$0xff]
      %v715 = vld [vmem:[%s6 + $0x8] sm:$0xff]
      %717 = vset.pattern.permute.xlu0 0
      %718 = vperm.xlu0 %717, %v714
      %v719 = vpop.permute.xlu0 %718
      %722 = vset.pattern.permute.xlu0 0
      %723 = vperm.xlu0 %722, %v715
      %v724 = vpop.permute.xlu0 %723
      %v726 = vadd.f32 %v710, %v719
      %v727 = vadd.f32 %v711, %v719
      %v728 = vadd.f32 %v712, %v724
      %v729 = vadd.f32 %v713, %v724
      %v730 = vmax.f32 %v726, 0.0
      %v731 = vmax.f32 %v727, 0.0
      %v732 = vmax.f32 %v728, 0.0
      %v733 = vmax.f32 %v729, 0.0
      %734 = vrot.lane.b32.xlu0 %v730, 127
      %v735 = vpop.permute.xlu0 %734
      %736 = vrot.lane.b32.xlu0 %v732, 127
      %v737 = vpop.permute.xlu0 %736
      %738 = vrot.lane.b32.xlu0 %v731, 127
      %v739 = vpop.permute.xlu0 %738
      %740 = vrot.lane.b32.xlu0 %v733, 127
      %v741 = vpop.permute.xlu0 %740
      %v742 = vsel %vm448, %v735, %v739
      %v743 = vsel %vm448, %v737, %v741
      %v744 = vsel %vm448, %v739, %v735
      %v745 = vsel %vm448, %v741, %v737
      %746 = vrot.lane.b32.xlu0 %v730, 126
      %v747 = vpop.permute.xlu0 %746
      %748 = vrot.lane.b32.xlu0 %v732, 126
      %v749 = vpop.permute.xlu0 %748
      %750 = vrot.lane.b32.xlu0 %v731, 126
      %v751 = vpop.permute.xlu0 %750
      %752 = vrot.lane.b32.xlu0 %v733, 126
      %v753 = vpop.permute.xlu0 %752
      %v754 = vsel %vm455, %v747, %v751
      %v755 = vsel %vm455, %v749, %v753
      %v756 = vsel %vm455, %v751, %v747
      %v757 = vsel %vm455, %v753, %v749
      %758 = vrot.lane.b32.xlu0 %v730, 112
      %v759 = vpop.permute.xlu0 %758
      %760 = vrot.lane.b32.xlu0 %v732, 112
      %v761 = vpop.permute.xlu0 %760
      %762 = vrot.lane.b32.xlu0 %v731, 112
      %v763 = vpop.permute.xlu0 %762
      %764 = vrot.lane.b32.xlu0 %v733, 112
      %v765 = vpop.permute.xlu0 %764
      %v766 = vsel %vm462, %v759, %v763
      %v767 = vsel %vm462, %v761, %v765
      %v768 = vsel %vm462, %v763, %v759
      %v769 = vsel %vm462, %v765, %v761
      %770 = vrot.lane.b32.xlu0 %v730, 111
      %v771 = vpop.permute.xlu0 %770
      %772 = vrot.lane.b32.xlu0 %v732, 111
      %v773 = vpop.permute.xlu0 %772
      %774 = vrot.lane.b32.xlu0 %v731, 111
      %v775 = vpop.permute.xlu0 %774
      %776 = vrot.lane.b32.xlu0 %v733, 111
      %v777 = vpop.permute.xlu0 %776
      %v778 = vsel %vm469, %v771, %v775
      %v779 = vsel %vm469, %v773, %v777
      %v780 = vsel %vm469, %v775, %v771
      %v781 = vsel %vm469, %v777, %v773
      %782 = vrot.lane.b32.xlu0 %v730, 110
      %v783 = vpop.permute.xlu0 %782
      %784 = vrot.lane.b32.xlu0 %v732, 110
      %v785 = vpop.permute.xlu0 %784
      %786 = vrot.lane.b32.xlu0 %v731, 110
      %v787 = vpop.permute.xlu0 %786
      %788 = vrot.lane.b32.xlu0 %v733, 110
      %v789 = vpop.permute.xlu0 %788
      %v790 = vsel %vm476, %v783, %v787
      %v791 = vsel %vm476, %v785, %v789
      %v792 = vsel %vm476, %v787, %v783
      %v793 = vsel %vm476, %v789, %v785
      %794 = vrot.lane.b32.xlu0 %v730, 96
      %v795 = vpop.permute.xlu0 %794
      %796 = vrot.lane.b32.xlu0 %v732, 96
      %v797 = vpop.permute.xlu0 %796
      %798 = vrot.lane.b32.xlu0 %v731, 96
      %v799 = vpop.permute.xlu0 %798
      %800 = vrot.lane.b32.xlu0 %v733, 96
      %v801 = vpop.permute.xlu0 %800
      %v802 = vsel %vm483, %v795, %v799
      %v803 = vsel %vm483, %v797, %v801
      %v804 = vsel %vm483, %v799, %v795
      %v805 = vsel %vm483, %v801, %v797
      %806 = vrot.lane.b32.xlu0 %v730, 95
      %v807 = vpop.permute.xlu0 %806
      %808 = vrot.lane.b32.xlu0 %v732, 95
      %v809 = vpop.permute.xlu0 %808
      %810 = vrot.lane.b32.xlu0 %v731, 95
      %v811 = vpop.permute.xlu0 %810
      %812 = vrot.lane.b32.xlu0 %v733, 95
      %v813 = vpop.permute.xlu0 %812
      %v814 = vsel %vm490, %v807, %v811
      %v815 = vsel %vm490, %v809, %v813
      %v816 = vsel %vm490, %v811, %v807
      %v817 = vsel %vm490, %v813, %v809
      %818 = vrot.lane.b32.xlu0 %v730, 94
      %v819 = vpop.permute.xlu0 %818
      %820 = vrot.lane.b32.xlu0 %v732, 94
      %v821 = vpop.permute.xlu0 %820
      %822 = vrot.lane.b32.xlu0 %v731, 94
      %v823 = vpop.permute.xlu0 %822
      %824 = vrot.lane.b32.xlu0 %v733, 94
      %v825 = vpop.permute.xlu0 %824
      %v826 = vsel %vm497, %v819, %v823
      %v827 = vsel %vm497, %v821, %v825
      %v828 = vsel %vm497, %v823, %v819
      %v829 = vsel %vm497, %v825, %v821
      %v830 = vpack.c.bf16 %v732, %v730
      %v831 = vpack.c.bf16 %v733, %v731
      %v832 = vpack.c.bf16 %v743, %v742
      %v833 = vpack.c.bf16 %v745, %v744
      %v834 = vpack.c.bf16 %v755, %v754
      %v835 = vpack.c.bf16 %v757, %v756
      %v836 = vpack.c.bf16 %v767, %v766
      %v837 = vpack.c.bf16 %v769, %v768
      %v838 = vpack.c.bf16 %v779, %v778
      %v839 = vpack.c.bf16 %v781, %v780
      %v840 = vpack.c.bf16 %v791, %v790
      %v841 = vpack.c.bf16 %v793, %v792
      %v842 = vpack.c.bf16 %v803, %v802
      %v843 = vpack.c.bf16 %v805, %v804
      %v844 = vpack.c.bf16 %v815, %v814
      %v845 = vpack.c.bf16 %v817, %v816
      %v846 = vpack.c.bf16 %v827, %v826
      %v847 = vpack.c.bf16 %v829, %v828
      %v848 = vld [vmem:[%s7] sm:$0xff]
      %v849 = vld [vmem:[%s7 + $0x8] sm:$0xff]
      %v852 = vunpack.c.l.b16 %v848
      %v853 = vunpack.c.h.b16 %v848
      %v854 = vunpack.c.l.b16 %v849
      %v855 = vunpack.c.h.b16 %v849
      %v856 = vpack.c.b16 %v854, %v852
      %v857 = vpack.c.b16 %v855, %v853
      %vm859 = vcmask 130048
      %v861 = vsel %vm859, %v857, 0
      %863 = vmatprep.subr.bf16.mxu0 %v831
      %864 = vmatpush1.bf16.msra.mxu0 %v830
      %865 = vmatprep.subr.bf16.mxu0 %v833
      %866 = vmatpush1.bf16.msra.mxu0 %v832
      %867 = vmatprep.subr.bf16.mxu0 %v835
      %868 = vmatpush1.bf16.msra.mxu0 %v834
      %869 = vmatprep.subr.bf16.mxu0 %v837
      %870 = vmatpush1.bf16.msra.mxu0 %v836
      %871 = vmatprep.subr.bf16.mxu0 %v839
      %872 = vmatpush1.bf16.msra.mxu0 %v838
      %873 = vmatprep.subr.bf16.mxu0 %v841
      %874 = vmatpush1.bf16.msra.mxu0 %v840
      %875 = vmatprep.subr.bf16.mxu0 %v843
      %876 = vmatpush1.bf16.msra.mxu0 %v842
      %877 = vmatprep.subr.bf16.mxu0 %v845
      %878 = vmatpush1.bf16.msra.mxu0 %v844
      %879 = vmatprep.subr.bf16.mxu0 %v847
      %880 = vmatpush1.bf16.msra.mxu0 %v846
      %881 = vmatprep.subr.bf16.mxu0 0
      %882 = vmatpush1.bf16.msra.mxu0 0
      %883 = vmatprep.subr.bf16.mxu0 0
      %884 = vmatpush1.bf16.msra.mxu0 0
      %885 = vmatprep.subr.bf16.mxu0 0
      %886 = vmatpush1.bf16.msra.mxu0 0
      %887 = vmatprep.subr.bf16.mxu0 0
      %888 = vmatpush1.bf16.msra.mxu0 0
      %889 = vmatprep.subr.bf16.mxu0 0
      %890 = vmatpush1.bf16.msra.mxu0 0
      %891 = vmatprep.subr.bf16.mxu0 0
      %892 = vmatpush1.bf16.msra.mxu0 0
      %893 = vmatprep.subr.bf16.mxu0 0
      %894 = vmatpush1.bf16.msra.mxu0 0
      %895 = vmatprep.mubr.bf16.mxu0 %v861
      %896 = vmatmul.mubr.bf16.gmra.mrb[0].mxu0 %v856
      %v897 = vpop.f32.mrb[0].mxu0
      %v898 = vadd.f32 0.0, %v897
      %v899 = vpop.f32.mrb[0].mxu0
      %v900 = vadd.f32 0.0, %v899
      %v901 = vpop.f32.mrb[0].mxu0
      %v902 = vadd.f32 0.0, %v901
      %v903 = vpop.f32.mrb[0].mxu0
      %v904 = vadd.f32 0.0, %v903
      %905 = vdwg.mxu0
      %v906 = vld [vmem:[%s8] sm:$0xff]
      %v907 = vld [vmem:[%s8 + $0x8] sm:$0xff]
      %909 = vset.pattern.permute.xlu0 0
      %910 = vperm.xlu0 %909, %v906
      %v911 = vpop.permute.xlu0 %910
      %914 = vset.pattern.permute.xlu0 0
      %915 = vperm.xlu0 %914, %v907
      %v916 = vpop.permute.xlu0 %915
      %v918 = vmul.f32 %v898, %v911
      %v919 = vmul.f32 %v900, %v911
      %v920 = vmul.f32 %v902, %v916
      %v921 = vmul.f32 %v904, %v916
      %v922 = vld [vmem:[%s9] sm:$0xff]
      %v923 = vld [vmem:[%s9 + $0x8] sm:$0xff]
      %925 = vset.pattern.permute.xlu0 0
      %926 = vperm.xlu0 %925, %v922
      %v927 = vpop.permute.xlu0 %926
      %930 = vset.pattern.permute.xlu0 0
      %931 = vperm.xlu0 %930, %v923
      %v932 = vpop.permute.xlu0 %931
      %v934 = vadd.f32 %v918, %v927
      %v935 = vadd.f32 %v919, %v927
      %v936 = vadd.f32 %v920, %v932
      %v937 = vadd.f32 %v921, %v932
      %v938 = vmax.f32 %v934, 0.0
      %v939 = vmax.f32 %v935, 0.0
      %v940 = vmax.f32 %v936, 0.0
      %v941 = vmax.f32 %v937, 0.0
      %v942 = vld [vmem:[%s10] sm:$0xff]
      %v943 = vld [vmem:[%s10 + $0x8] sm:$0xff]
      %v944 = vld [vmem:[%s10 + $0x10] sm:$0xff]
      %v945 = vld [vmem:[%s10 + $0x18] sm:$0xff]
      %v946 = vld [vmem:[%s10 + $0x20] sm:$0xff]
      %v947 = vld [vmem:[%s10 + $0x28] sm:$0xff]
      %v948 = vld [vmem:[%s10 + $0x30] sm:$0xff]
      %v949 = vld [vmem:[%s10 + $0x38] sm:$0xff]
      %v950 = vld [vmem:[%s10 + $0x40] sm:$0xff]
      %v951 = vld [vmem:[%s10 + $0x48] sm:$0xff]
      %v952 = vld [vmem:[%s10 + $0x50] sm:$0xff]
      %v953 = vld [vmem:[%s10 + $0x58] sm:$0xff]
      %v954 = vld [vmem:[%s10 + $0x60] sm:$0xff]
      %v955 = vld [vmem:[%s10 + $0x68] sm:$0xff]
      %v956 = vld [vmem:[%s10 + $0x70] sm:$0xff]
      %v957 = vld [vmem:[%s10 + $0x78] sm:$0xff]
      %v958 = vld [vmem:[%s10 + $0x80] sm:$0xff]
      %v959 = vld [vmem:[%s10 + $0x88] sm:$0xff]
      %v960 = vld [vmem:[%s10 + $0x90] sm:$0xff]
      %v961 = vld [vmem:[%s10 + $0x98] sm:$0xff]
      %v962 = vld [vmem:[%s10 + $0xa0] sm:$0xff]
      %v963 = vld [vmem:[%s10 + $0xa8] sm:$0xff]
      %v964 = vld [vmem:[%s10 + $0xb0] sm:$0xff]
      %v965 = vld [vmem:[%s10 + $0xb8] sm:$0xff]
      %v966 = vld [vmem:[%s10 + $0xc0] sm:$0xff]
      %v967 = vld [vmem:[%s10 + $0xc8] sm:$0xff]
      %v968 = vld [vmem:[%s10 + $0xd0] sm:$0xff]
      %v969 = vld [vmem:[%s10 + $0xd8] sm:$0xff]
      %v970 = vld [vmem:[%s10 + $0xe0] sm:$0xff]
      %v971 = vld [vmem:[%s10 + $0xe8] sm:$0xff]
      %v972 = vld [vmem:[%s10 + $0xf0] sm:$0xff]
      %v973 = vld [vmem:[%s10 + $0xf8] sm:$0xff]
      %v974 = vmul.f32 %v942, %v938
      %v975 = vmul.f32 %v943, %v939
      %v976 = vmul.f32 %v944, %v940
      %v977 = vmul.f32 %v945, %v941
      %v978 = vmul.f32 %v946, %v938
      %v979 = vmul.f32 %v947, %v939
      %v980 = vmul.f32 %v948, %v940
      %v981 = vmul.f32 %v949, %v941
      %v982 = vmul.f32 %v950, %v938
      %v983 = vmul.f32 %v951, %v939
      %v984 = vmul.f32 %v952, %v940
      %v985 = vmul.f32 %v953, %v941
      %v986 = vmul.f32 %v954, %v938
      %v987 = vmul.f32 %v955, %v939
      %v988 = vmul.f32 %v956, %v940
      %v989 = vmul.f32 %v957, %v941
      %v990 = vmul.f32 %v958, %v938
      %v991 = vmul.f32 %v959, %v939
      %v992 = vmul.f32 %v960, %v940
      %v993 = vmul.f32 %v961, %v941
      %v994 = vmul.f32 %v962, %v938
      %v995 = vmul.f32 %v963, %v939
      %v996 = vmul.f32 %v964, %v940
      %v997 = vmul.f32 %v965, %v941
      %v998 = vmul.f32 %v966, %v938
      %v999 = vmul.f32 %v967, %v939
      %v1000 = vmul.f32 %v968, %v940
      %v1001 = vmul.f32 %v969, %v941
      %v1002 = vmul.f32 %v970, %v938
      %v1003 = vmul.f32 %v971, %v939
      %v1004 = vmul.f32 %v972, %v940
      %v1005 = vmul.f32 %v973, %v941
      %v1006 = vadd.f32 %v974, %v976
      %v1007 = vrot.slane %v1006, 4
      %v1008 = vadd.f32 %v1006, %v1007
      %v1009 = vrot.slane %v1008, 2
      %v1010 = vadd.f32 %v1008, %v1009
      %v1011 = vrot.slane %v1010, 1
      %v1012 = vadd.f32 %v1010, %v1011
      %v1013 = vadd.f32 %v975, %v977
      %v1014 = vrot.slane %v1013, 4
      %v1015 = vadd.f32 %v1013, %v1014
      %v1016 = vrot.slane %v1015, 2
      %v1017 = vadd.f32 %v1015, %v1016
      %v1018 = vrot.slane %v1017, 1
      %v1019 = vadd.f32 %v1017, %v1018
      %v1020 = vadd.f32 %v978, %v980
      %v1021 = vrot.slane %v1020, 4
      %v1022 = vadd.f32 %v1020, %v1021
      %v1023 = vrot.slane %v1022, 2
      %v1024 = vadd.f32 %v1022, %v1023
      %v1025 = vrot.slane %v1024, 1
      %v1026 = vadd.f32 %v1024, %v1025
      %v1027 = vadd.f32 %v979, %v981
      %v1028 = vrot.slane %v1027, 4
      %v1029 = vadd.f32 %v1027, %v1028
      %v1030 = vrot.slane %v1029, 2
      %v1031 = vadd.f32 %v1029, %v1030
      %v1032 = vrot.slane %v1031, 1
      %v1033 = vadd.f32 %v1031, %v1032
      %v1034 = vadd.f32 %v982, %v984
      %v1035 = vrot.slane %v1034, 4
      %v1036 = vadd.f32 %v1034, %v1035
      %v1037 = vrot.slane %v1036, 2
      %v1038 = vadd.f32 %v1036, %v1037
      %v1039 = vrot.slane %v1038, 1
      %v1040 = vadd.f32 %v1038, %v1039
      %v1041 = vadd.f32 %v983, %v985
      %v1042 = vrot.slane %v1041, 4
      %v1043 = vadd.f32 %v1041, %v1042
      %v1044 = vrot.slane %v1043, 2
      %v1045 = vadd.f32 %v1043, %v1044
      %v1046 = vrot.slane %v1045, 1
      %v1047 = vadd.f32 %v1045, %v1046
      %v1048 = vadd.f32 %v986, %v988
      %v1049 = vrot.slane %v1048, 4
      %v1050 = vadd.f32 %v1048, %v1049
      %v1051 = vrot.slane %v1050, 2
      %v1052 = vadd.f32 %v1050, %v1051
      %v1053 = vrot.slane %v1052, 1
      %v1054 = vadd.f32 %v1052, %v1053
      %v1055 = vadd.f32 %v987, %v989
      %v1056 = vrot.slane %v1055, 4
      %v1057 = vadd.f32 %v1055, %v1056
      %v1058 = vrot.slane %v1057, 2
      %v1059 = vadd.f32 %v1057, %v1058
      %v1060 = vrot.slane %v1059, 1
      %v1061 = vadd.f32 %v1059, %v1060
      %v1062 = vadd.f32 %v990, %v992
      %v1063 = vrot.slane %v1062, 4
      %v1064 = vadd.f32 %v1062, %v1063
      %v1065 = vrot.slane %v1064, 2
      %v1066 = vadd.f32 %v1064, %v1065
      %v1067 = vrot.slane %v1066, 1
      %v1068 = vadd.f32 %v1066, %v1067
      %v1069 = vadd.f32 %v991, %v993
      %v1070 = vrot.slane %v1069, 4
      %v1071 = vadd.f32 %v1069, %v1070
      %v1072 = vrot.slane %v1071, 2
      %v1073 = vadd.f32 %v1071, %v1072
      %v1074 = vrot.slane %v1073, 1
      %v1075 = vadd.f32 %v1073, %v1074
      %v1076 = vadd.f32 %v994, %v996
      %v1077 = vrot.slane %v1076, 4
      %v1078 = vadd.f32 %v1076, %v1077
      %v1079 = vrot.slane %v1078, 2
      %v1080 = vadd.f32 %v1078, %v1079
      %v1081 = vrot.slane %v1080, 1
      %v1082 = vadd.f32 %v1080, %v1081
      %v1083 = vadd.f32 %v995, %v997
      %v1084 = vrot.slane %v1083, 4
      %v1085 = vadd.f32 %v1083, %v1084
      %v1086 = vrot.slane %v1085, 2
      %v1087 = vadd.f32 %v1085, %v1086
      %v1088 = vrot.slane %v1087, 1
      %v1089 = vadd.f32 %v1087, %v1088
      %v1090 = vadd.f32 %v998, %v1000
      %v1091 = vrot.slane %v1090, 4
      %v1092 = vadd.f32 %v1090, %v1091
      %v1093 = vrot.slane %v1092, 2
      %v1094 = vadd.f32 %v1092, %v1093
      %v1095 = vrot.slane %v1094, 1
      %v1096 = vadd.f32 %v1094, %v1095
      %v1097 = vadd.f32 %v999, %v1001
      %v1098 = vrot.slane %v1097, 4
      %v1099 = vadd.f32 %v1097, %v1098
      %v1100 = vrot.slane %v1099, 2
      %v1101 = vadd.f32 %v1099, %v1100
      %v1102 = vrot.slane %v1101, 1
      %v1103 = vadd.f32 %v1101, %v1102
      %v1104 = vadd.f32 %v1002, %v1004
      %v1105 = vrot.slane %v1104, 4
      %v1106 = vadd.f32 %v1104, %v1105
      %v1107 = vrot.slane %v1106, 2
      %v1108 = vadd.f32 %v1106, %v1107
      %v1109 = vrot.slane %v1108, 1
      %v1110 = vadd.f32 %v1108, %v1109
      %v1111 = vadd.f32 %v1003, %v1005
      %v1112 = vrot.slane %v1111, 4
      %v1113 = vadd.f32 %v1111, %v1112
      %v1114 = vrot.slane %v1113, 2
      %v1115 = vadd.f32 %v1113, %v1114
      %v1116 = vrot.slane %v1115, 1
      %v1117 = vadd.f32 %v1115, %v1116
      %v1118 = vld [vmem:[%s11] sm:$0xff]
      %v1119 = vld [vmem:[%s11 + $0x8] sm:$0xff]
      %v1120 = vld [vmem:[%s11 + $0x10] sm:$0xff]
      %v1121 = vld [vmem:[%s11 + $0x18] sm:$0xff]
      %v1122 = vld [vmem:[%s11 + $0x20] sm:$0xff]
      %v1123 = vld [vmem:[%s11 + $0x28] sm:$0xff]
      %v1124 = vld [vmem:[%s11 + $0x30] sm:$0xff]
      %v1125 = vld [vmem:[%s11 + $0x38] sm:$0xff]
      %v1126 = vld [vmem:[%s11 + $0x40] sm:$0xff]
      %v1127 = vld [vmem:[%s11 + $0x48] sm:$0xff]
      %v1128 = vld [vmem:[%s11 + $0x50] sm:$0xff]
      %v1129 = vld [vmem:[%s11 + $0x58] sm:$0xff]
      %v1130 = vld [vmem:[%s11 + $0x60] sm:$0xff]
      %v1131 = vld [vmem:[%s11 + $0x68] sm:$0xff]
      %v1132 = vld [vmem:[%s11 + $0x70] sm:$0xff]
      %v1133 = vld [vmem:[%s11 + $0x78] sm:$0xff]
      %v1134 = vld [vmem:[%s11 + $0x80] sm:$0xff]
      %v1135 = vld [vmem:[%s11 + $0x88] sm:$0xff]
      %v1136 = vld [vmem:[%s11 + $0x90] sm:$0xff]
      %v1137 = vld [vmem:[%s11 + $0x98] sm:$0xff]
      %v1138 = vld [vmem:[%s11 + $0xa0] sm:$0xff]
      %v1139 = vld [vmem:[%s11 + $0xa8] sm:$0xff]
      %v1140 = vld [vmem:[%s11 + $0xb0] sm:$0xff]
      %v1141 = vld [vmem:[%s11 + $0xb8] sm:$0xff]
      %v1142 = vld [vmem:[%s11 + $0xc0] sm:$0xff]
      %v1143 = vld [vmem:[%s11 + $0xc8] sm:$0xff]
      %v1144 = vld [vmem:[%s11 + $0xd0] sm:$0xff]
      %v1145 = vld [vmem:[%s11 + $0xd8] sm:$0xff]
      %v1146 = vld [vmem:[%s11 + $0xe0] sm:$0xff]
      %v1147 = vld [vmem:[%s11 + $0xe8] sm:$0xff]
      %v1148 = vld [vmem:[%s11 + $0xf0] sm:$0xff]
      %v1149 = vld [vmem:[%s11 + $0xf8] sm:$0xff]
      %v1150 = vld [vmem:[%s12] sm:$0xff]
      %vm1167 = vcmask 1041409
      %v1168 = vsel %vm1167, %v1026, %v1012
      %vm1169 = vcmask 1042434
      %v1170 = vsel %vm1169, %v1040, %v1168
      %vm1171 = vcmask 1043459
      %v1172 = vsel %vm1171, %v1054, %v1170
      %vm1173 = vcmask 1044484
      %v1174 = vsel %vm1173, %v1068, %v1172
      %vm1175 = vcmask 1045509
      %v1176 = vsel %vm1175, %v1082, %v1174
      %vm1177 = vcmask 1046534
      %v1178 = vsel %vm1177, %v1096, %v1176
      %vm1179 = vcmask 1047559
      %v1180 = vsel %vm1179, %v1110, %v1178
      %v1181 = vsel %vm1167, %v1033, %v1019
      %v1182 = vsel %vm1169, %v1047, %v1181
      %v1183 = vsel %vm1171, %v1061, %v1182
      %v1184 = vsel %vm1173, %v1075, %v1183
      %v1185 = vsel %vm1175, %v1089, %v1184
      %v1186 = vsel %vm1177, %v1103, %v1185
      %v1187 = vsel %vm1179, %v1117, %v1186
      %1190 = vmatprep.subr.mxu0 0.0
      %1191 = vmatpush1.msra.mxu0 %v1118
      %1192 = vmatprep.subr.mxu0 0.0
      %1193 = vmatpush1.msra.mxu0 %v1119
      %1194 = vmatprep.subr.mxu0 0.0
      %1195 = vmatpush1.msra.mxu0 %v1120
      %1196 = vmatprep.subr.mxu0 0.0
      %1197 = vmatpush1.msra.mxu0 %v1121
      %1198 = vmatprep.subr.mxu0 0.0
      %1199 = vmatpush1.msra.mxu0 %v1122
      %1200 = vmatprep.subr.mxu0 0.0
      %1201 = vmatpush1.msra.mxu0 %v1123
      %1202 = vmatprep.subr.mxu0 0.0
      %1203 = vmatpush1.msra.mxu0 %v1124
      %1204 = vmatprep.subr.mxu0 0.0
      %1205 = vmatpush1.msra.mxu0 %v1125
      %1206 = vmatprep.subr.mxu0 0.0
      %1207 = vmatpush1.msra.mxu0 %v1126
      %1208 = vmatprep.subr.mxu0 0.0
      %1209 = vmatpush1.msra.mxu0 %v1127
      %1210 = vmatprep.subr.mxu0 0.0
      %1211 = vmatpush1.msra.mxu0 %v1128
      %1212 = vmatprep.subr.mxu0 0.0
      %1213 = vmatpush1.msra.mxu0 %v1129
      %1214 = vmatprep.subr.mxu0 0.0
      %1215 = vmatpush1.msra.mxu0 %v1130
      %1216 = vmatprep.subr.mxu0 0.0
      %1217 = vmatpush1.msra.mxu0 %v1131
      %1218 = vmatprep.subr.mxu0 0.0
      %1219 = vmatpush1.msra.mxu0 %v1132
      %1220 = vmatprep.subr.mxu0 0.0
      %1221 = vmatpush1.msra.mxu0 %v1133
      %1222 = vmatprep.subr.mxu0 0.0
      %1223 = vmatpush1.msra.mxu0 %v1134
      %1224 = vmatprep.subr.mxu0 0.0
      %1225 = vmatpush1.msra.mxu0 %v1135
      %1226 = vmatprep.subr.mxu0 0.0
      %1227 = vmatpush1.msra.mxu0 %v1136
      %1228 = vmatprep.subr.mxu0 0.0
      %1229 = vmatpush1.msra.mxu0 %v1137
      %1230 = vmatprep.subr.mxu0 0.0
      %1231 = vmatpush1.msra.mxu0 %v1138
      %1232 = vmatprep.subr.mxu0 0.0
      %1233 = vmatpush1.msra.mxu0 %v1139
      %1234 = vmatprep.subr.mxu0 0.0
      %1235 = vmatpush1.msra.mxu0 %v1140
      %1236 = vmatprep.subr.mxu0 0.0
      %1237 = vmatpush1.msra.mxu0 %v1141
      %1238 = vmatprep.subr.mxu0 0.0
      %1239 = vmatpush1.msra.mxu0 %v1142
      %1240 = vmatprep.subr.mxu0 0.0
      %1241 = vmatpush1.msra.mxu0 %v1143
      %1242 = vmatprep.subr.mxu0 0.0
      %1243 = vmatpush1.msra.mxu0 %v1144
      %1244 = vmatprep.subr.mxu0 0.0
      %1245 = vmatpush1.msra.mxu0 %v1145
      %1246 = vmatprep.subr.mxu0 0.0
      %1247 = vmatpush1.msra.mxu0 %v1146
      %1248 = vmatprep.subr.mxu0 0.0
      %1249 = vmatpush1.msra.mxu0 %v1147
      %1250 = vmatprep.subr.mxu0 0.0
      %1251 = vmatpush1.msra.mxu0 %v1148
      %1252 = vmatprep.subr.mxu0 0.0
      %1253 = vmatpush1.msra.mxu0 %v1149
      %1254 = vmatprep.mubr.f32.mxu0 %v1187
      %1255 = vmatmul.mubr.f32.gmra.mrb[0].mxu0 %v1180
      %v1256 = vpop.f32.mrb[0].mxu0
      %v1257 = vadd.f32 %v1150, %v1256
      %v1258 = vpop.f32.mrb[0].mxu0
      %1259 = vdwg.mxu0
      %vm1260 = vcmask 7168
      %1261 = vst.msk [vmem:[%s438] sm:$0xff] %vm1260, %v1257
      %p1262 = scmp.lt.s32.totalorder %s24, 1
      %s1263 = scalar_select %p1262, %s24, 1
      %s1264 = smul.addr %s1263, 8
      %s1265 = scalar_lea.vmem %s13, %s1264
      // Predicated region
      $region73: #{forward.1} parent=71 // pred_check
        %p1266 = pneg %p320
      $region74: #{forward.1} parent=71 // pred_check_branch
        %1268 = sbr.rel (%p1266) target = $region76
      $region75: #{forward.1} parent=71 // pred_region
        _
      $region76: #{forward.1} parent=71 // pred_fallthru
        _
    $region72: #{forward.1} parent=5 // pred_fallthru
      _
    %p1269 = scmp.le.s32.totalorder 2, %s19
    // Predicated region
    $region77: #{forward.1} parent=5 // pred_check
      %p1270 = pneg %p1269
    $region78: #{forward.1} parent=5 // pred_check_branch
      %1272 = sbr.rel (%p1270) target = $region80
    $region79: #{forward.1} parent=5 // pred_region
      %s1273 = ssub.s32 %s19, 2
      // Predicated region
      $region81: #{forward.1} parent=79 // pred_check
        %p1274 = pneg %p326
      $region82: #{forward.1} parent=79 // pred_check_branch
        %1276 = sbr.rel (%p1274) target = $region84
      $region83: #{forward.1} parent=79 // pred_region
        %p1277 = scmp.lt.s32.totalorder %s25, 1
        %s1278 = scalar_select %p1277, %s25, 1
        %s1279 = smul.addr %s1278, 8
        %s1280 = scalar_lea.vmem %s13, %s1279
      $region84: #{forward.1} parent=79 // pred_fallthru
        _
    $region80: #{forward.1} parent=5 // pred_fallthru
      _
  $region6: #{forward.1} parent=0 // loop_footer
    %s23 = sadd.s32 1, %s19
  $region7: #{forward.1} parent=0 // loop_footer_branch
    %18 = sbr.rel target = $region3
  $region8: #{forward.1} parent=0 // loop_exit
    _

</llo_original>
